<compile_context>
chip_gen: v5e
topology: v5e:2x2
jax: 0.10.0
libtpu: 0.0.40
codegen_flags: <defaults>
</compile_context>

<pallas_src>
import functools
import math

import jax
import jax.numpy as jnp
from jax.experimental import pallas as pl
from jax.experimental.pallas import tpu as pltpu


def _round_up(n, m):
    return ((n + m - 1) // m) * m


# ---------------------------------------------------------------------------
# VMEM-budgeted tile planner.
# ---------------------------------------------------------------------------
def _plan_tiles(B, C, HW, H, OP, L):
    BUDGET = 24 << 20  # conservative: fits v7x's 32 MiB default scoped VMEM

    # Resident weight bytes (counted double-buffered = worst case, in case the
    # single-buffer request below is not honored).
    w_elems_bf16 = 4 * C * H + C * H + L * H * H + H * OP
    w_elems_f32 = (L + 1) * 3 * H + OP
    w_bytes = 2 * (2 * w_elems_bf16 + 4 * w_elems_f32)

    # Candidate batch tiles: multiples of 8 dividing B, else the full batch.
    if B % 8 == 0:
        tb_cands = sorted({t for t in range(8, B + 1, 8) if B % t == 0},
                          reverse=True)
    else:
        tb_cands = [B]
    # Candidate HW chunks: full HW, or divisors that are multiples of 128
    # (keeps the fmap block lane-dense / layout-legal).
    hw_cands = sorted({HW} | {d for d in range(128, HW, 128) if HW % d == 0},
                      reverse=True)
    min_hw = hw_cands[-1]

    def vmem(tb, hw_c):
        return (w_bytes
                + 2 * tb * C * hw_c * 2      # fmap tile (bf16, double-buffered)
                + 2 * tb * 4 * C * 2         # cls tile  (bf16, double-buffered)
                + 2 * tb * OP * 4            # out tile  (f32,  double-buffered)
                + tb * C * 4)                # spatial-sum scratch (f32)

    # 1) Largest batch tile that fits (with the smallest HW chunk), keeping
    #    nb >= 2 whenever B >= 16 so both v7x TensorCores get work and the
    #    pipeline has something to overlap.
    tile_b = None
    for tb in tb_cands:
        if B >= 16 and B // tb < 2:
            continue
        if vmem(tb, min_hw) <= BUDGET:
            tile_b = tb
            break
    if tile_b is None:
        tile_b = min(tb_cands)
    nb = B // tile_b

    # 2) Largest HW chunk that fits; if the batch grid is a single step,
    #    prefer >= 2 HW chunks so DMA/compute pipelining still happens.
    fitting = [hw for hw in hw_cands if vmem(tile_b, hw) <= BUDGET] or [min_hw]
    hw_chunk = fitting[0]
    if nb == 1:
        multi = [hw for hw in fitting if HW // hw >= 2]
        if multi:
            hw_chunk = multi[0]
    return tile_b, hw_chunk


# ---------------------------------------------------------------------------
# Pallas kernel:
#   chunked spatial-sum -> (on last chunk) Linear -> [LN -> ReLU -> Linear]xL
#   -> LN -> ReLU -> output Linear (lane-padded)
# ---------------------------------------------------------------------------
def _ffn_kernel(*refs, hidden_layers, inv_hw):
    cls_ref, fmap_ref, w_in_cls_ref, w_in_mean_ref = refs[:4]
    idx = 4
    if hidden_layers > 0:
        w_hid_ref = refs[idx]
        idx += 1
    ln_ref = refs[idx]          # (L+1, 3, H) f32: [linear bias, gamma, beta]
    w_out_ref = refs[idx + 1]   # (H, OP) bf16, OP = output_dim padded to 128
    b_out_ref = refs[idx + 2]   # (1, OP) f32
    out_ref = refs[idx + 3]     # (TILE_B, OP) f32
    sum_sc = refs[idx + 4]      # (TILE_B, C) f32 scratch: spatial sum

    f32 = jnp.float32
    bf16 = jnp.bfloat16
    j = pl.program_id(1)
    n_hw = pl.num_programs(1)

    @pl.when(j == 0)
    def _():
        sum_sc[...] = jnp.zeros_like(sum_sc)

    # Partial spatial sum over this HW chunk (f32 accumulation of bf16 data).
    sum_sc[...] += jnp.sum(fmap_ref[...].astype(f32), axis=-1)

    @pl.when(j == n_hw - 1)
    def _():
        smean = (sum_sc[...] * inv_hw).astype(bf16)          # (TILE_B, C)

        # First Linear with the concat folded away: 2 MXU dots (bf16 in,
        # f32 accumulate), equivalent to concat([cls, smean], 1) @ W_in.
        z = jnp.dot(cls_ref[...], w_in_cls_ref[...], preferred_element_type=f32)
        z = z + jnp.dot(smean, w_in_mean_ref[...], preferred_element_type=f32)

        def ln_relu(z, lidx):
            lnp = ln_ref[lidx]                               # (3, H), read once
            bias, gamma, beta = lnp[0:1, :], lnp[1:2, :], lnp[2:3, :]
            zb = z + bias
            mu = jnp.mean(zb, axis=-1, keepdims=True)
            var = jnp.mean(jnp.square(zb - mu), axis=-1, keepdims=True)
            scale = gamma * jax.lax.rsqrt(var + 1e-5)        # EUP rsqrt
            return jnp.maximum((zb - mu) * scale + beta, 0.0)

        h = ln_relu(z, 0)
        for l in range(hidden_layers):                       # static unroll
            z = jnp.dot(h.astype(bf16), w_hid_ref[l], preferred_element_type=f32)
            h = ln_relu(z, l + 1)

        # Output Linear, lane-padded to OP -> unmasked lane-dense store.
        out_ref[...] = (jnp.dot(h.astype(bf16), w_out_ref[...],
                                preferred_element_type=f32)
                        + b_out_ref[...])


# ---------------------------------------------------------------------------
# Wrapper around pallas_call.
# ---------------------------------------------------------------------------
def ffn_pallas(cls_cat, fmap_flat, params, hidden_layers, output_dim):
    w_in_cls, w_in_mean, w_hid, ln, w_out_p, b_out_p = params
    B, C4 = cls_cat.shape
    C, HW = fmap_flat.shape[1], fmap_flat.shape[2]
    H = w_in_cls.shape[1]
    OP = w_out_p.shape[1]
    L = hidden_layers

    TILE_B, HW_CHUNK = _plan_tiles(B, C, HW, H, OP, L)
    nb, n_hw = B // TILE_B, HW // HW_CHUNK

    def build_and_run(single_buffer_weights):
        def resident(arr):
            zeros = (0,) * arr.ndim
            kwargs = {}
            if single_buffer_weights:
                # Constant index map -> no double buffering needed; frees VMEM.
                kwargs = dict(pipeline_mode=pl.Buffered(1))
            return pl.BlockSpec(arr.shape, lambda i, j, _z=zeros: _z, **kwargs)

        inputs = [cls_cat, fmap_flat, w_in_cls, w_in_mean]
        in_specs = [
            pl.BlockSpec((TILE_B, C4), lambda i, j: (i, 0)),
            pl.BlockSpec((TILE_B, C, HW_CHUNK), lambda i, j: (i, 0, j)),
            resident(w_in_cls), resident(w_in_mean),
        ]
        if L > 0:
            inputs.append(w_hid)
            in_specs.append(resident(w_hid))
        inputs += [ln, w_out_p, b_out_p]
        in_specs += [resident(ln), resident(w_out_p), resident(b_out_p)]

        out_spec = pl.BlockSpec((TILE_B, OP), lambda i, j: (i, 0))

        flops = 2 * B * (C4 * H + C * H + L * H * H + H * OP) + 2 * B * C * HW
        flops += 10 * B * (L + 1) * H
        bytes_accessed = int(sum(int(a.size) * a.dtype.itemsize for a in inputs)
                             + B * OP * 4)
        transcendentals = B * (L + 1)

        return pl.pallas_call(
            functools.partial(_ffn_kernel, hidden_layers=L, inv_hw=1.0 / HW),
            out_shape=jax.ShapeDtypeStruct((B, OP), jnp.float32),
            grid_spec=pltpu.PrefetchScalarGridSpec(
                num_scalar_prefetch=0,
                grid=(nb, n_hw),
                in_specs=in_specs,
                out_specs=out_spec,
                scratch_shapes=[pltpu.VMEM((TILE_B, C), jnp.float32)],
            ),
            compiler_params=pltpu.CompilerParams(
                dimension_semantics=("parallel", "arbitrary")),
            cost_estimate=pl.CostEstimate(flops=int(flops),
                                          transcendentals=int(transcendentals),
                                          bytes_accessed=bytes_accessed),
        )(*inputs)

    try:
        out = build_and_run(True)
    except Exception:
        # Portability guard: fall back to default (double-buffered) weights if
        # this jax build rejects pipeline_mode=pl.Buffered(1).
        out = build_and_run(False)
    return out[:, :output_dim]


# ---------------------------------------------------------------------------
# Packed parameter construction (matches the nn.Module's shapes / init style).
# ---------------------------------------------------------------------------
def init_params(key, channels, hidden_dim, output_dim, hidden_layers):
    C = channels
    input_dim = 5 * C
    OP = _round_up(output_dim, 128)
    bf16 = jnp.bfloat16

    key, kw, kb = jax.random.split(key, 3)
    bound = 1.0 / math.sqrt(input_dim)
    w_in = jax.random.uniform(kw, (input_dim, hidden_dim), jnp.float32,
                              -bound, bound)
    b1 = jax.random.uniform(kb, (hidden_dim,), jnp.float32, -bound, bound)
    w_in_cls = w_in[:4 * C].astype(bf16)     # (4C, H)
    w_in_mean = w_in[4 * C:].astype(bf16)    # (C, H)

    ones = jnp.ones((hidden_dim,), jnp.float32)
    zeros = jnp.zeros((hidden_dim,), jnp.float32)
    ln_rows = [jnp.stack([b1, ones, zeros])]

    bound_h = 1.0 / math.sqrt(hidden_dim)
    w_hid_list = []
    for _ in range(hidden_layers):
        key, kw, kb = jax.random.split(key, 3)
        w_hid_list.append(
            jax.random.uniform(kw, (hidden_dim, hidden_dim), jnp.float32,
                               -bound_h, bound_h))
        b = jax.random.uniform(kb, (hidden_dim,), jnp.float32,
                               -bound_h, bound_h)
        ln_rows.append(jnp.stack([b, ones, zeros]))
    w_hid = (jnp.stack(w_hid_list).astype(bf16) if hidden_layers > 0
             else jnp.zeros((0, hidden_dim, hidden_dim), bf16))
    ln = jnp.stack(ln_rows)                                  # (L+1, 3, H) f32

    key, kw, kb = jax.random.split(key, 3)
    w_out = jax.random.uniform(kw, (hidden_dim, output_dim), jnp.float32,
                               -bound_h, bound_h)
    b_out = jax.random.uniform(kb, (1, output_dim), jnp.float32,
                               -bound_h, bound_h)
    w_out_p = jnp.zeros((hidden_dim, OP), bf16).at[:, :output_dim].set(
        w_out.astype(bf16))
    b_out_p = jnp.zeros((1, OP), jnp.float32).at[:, :output_dim].set(b_out)

    return (w_in_cls, w_in_mean, w_hid, ln, w_out_p, b_out_p)


# ---------------------------------------------------------------------------
# Full forward: cheap bf16 casts + concat in the wrapper, everything else fused.
# ---------------------------------------------------------------------------
def recons_mapping_ffn_forward(x, params, hidden_layers, output_dim):
    # x: list of 4 pairs (feature_map NCHW, cls_token (B, C)), PyTorch-style.
    fmap = x[3][0]
    B, C = fmap.shape[0], fmap.shape[1]
    bf16 = jnp.bfloat16
    # bf16 inputs: halves the dominant HBM stream (fmap) and the cls DMAs; in
    # the full model these casts fuse into the backbone's last ops.
    fmap_flat = fmap.reshape(B, C, -1).astype(bf16)
    cls_cat = jnp.concatenate([x[0][1], x[1][1], x[2][1], x[3][1]],
                              axis=1).astype(bf16)
    # output_normalization=None -> output_op is Identity.
    # TODO(synk): 'sphere' / 'max_norm' output-normalization variants not wired in.
    return ffn_pallas(cls_cat, fmap_flat, params, hidden_layers, output_dim)


# Pure-JAX reference mirroring the kernel's numerics (bf16 in, f32 accumulate).
def _reference(x, params, hidden_layers, output_dim):
    w_in_cls, w_in_mean, w_hid, ln, w_out_p, b_out_p = params
    f32, bf16 = jnp.float32, jnp.bfloat16
    fmap = x[3][0]
    B, C = fmap.shape[0], fmap.shape[1]
    cls = jnp.concatenate([x[0][1], x[1][1], x[2][1], x[3][1]],
                          axis=1).astype(bf16)
    smean = fmap.reshape(B, C, -1).astype(bf16).astype(f32).mean(axis=2)
    z = (jnp.dot(cls, w_in_cls, preferred_element_type=f32)
         + jnp.dot(smean.astype(bf16), w_in_mean, preferred_element_type=f32))

    def ln_relu(z, lidx):
        bias, gamma, beta = ln[lidx, 0], ln[lidx, 1], ln[lidx, 2]
        zb = z + bias
        mu = jnp.mean(zb, axis=-1, keepdims=True)
        var = jnp.mean(jnp.square(zb - mu), axis=-1, keepdims=True)
        return jnp.maximum((zb - mu) * (gamma * jax.lax.rsqrt(var + 1e-5)) + beta,
                           0.0)

    h = ln_relu(z, 0)
    for l in range(hidden_layers):
        z = jnp.dot(h.astype(bf16), w_hid[l], preferred_element_type=f32)
        h = ln_relu(z, l + 1)
    out = jnp.dot(h.astype(bf16), w_out_p, preferred_element_type=f32) + b_out_p
    return out[:, :output_dim]


if __name__ == "__main__":
    B, C, Hs, Ws = 2, 4, 16, 16
    hidden_dim, output_dim, hidden_layers = 32, 16, 2

    key = jax.random.PRNGKey(0)
    key, *ks = jax.random.split(key, 9)
    # 4-stage backbone output: list of (feature_map NCHW, cls_token)
    x = [
        (
            jax.random.normal(ks[2 * i], (B, C, Hs, Ws), jnp.float32),
            jax.random.normal(ks[2 * i + 1], (B, C), jnp.float32),
        )
        for i in range(4)
    ]

    params = init_params(jax.random.PRNGKey(42), C, hidden_dim, output_dim,
                         hidden_layers)

    out = recons_mapping_ffn_forward(x, params, hidden_layers, output_dim)
    out = jax.block_until_ready(out)

    ref = _reference(x, params, hidden_layers, output_dim)
    assert out.shape == (B, output_dim)
    assert jnp.allclose(out, ref, atol=2e-3, rtol=2e-3), "mismatch vs reference"

    print("KERNEL_OK")
</pallas_src>

<mosaic_0001>
module attributes {stable_mosaic.version = 11 : i64} {
  func.func @_ffn_kernel(%arg0: i32, %arg1: i32, %arg2: memref<2x16xbf16, #tpu.memory_space<vmem>>, %arg3: memref<2x4x128xbf16, #tpu.memory_space<vmem>>, %arg4: memref<16x32xbf16, #tpu.memory_space<vmem>>, %arg5: memref<4x32xbf16, #tpu.memory_space<vmem>>, %arg6: memref<2x32x32xbf16, #tpu.memory_space<vmem>>, %arg7: memref<3x3x32xf32, #tpu.memory_space<vmem>>, %arg8: memref<32x128xbf16, #tpu.memory_space<vmem>>, %arg9: memref<1x128xf32, #tpu.memory_space<vmem>>, %arg10: memref<2x128xf32, #tpu.memory_space<vmem>>, %arg11: memref<2x4xf32, #tpu.memory_space<vmem>>) attributes {dimension_semantics = [#tpu.dimension_semantics<parallel>, #tpu.dimension_semantics<arbitrary>], iteration_bounds = array<i64: 1, 2>, scalar_prefetch = 0 : i64, scratch_operands = 1 : i64, tpu.core_type = #tpu.core_type<tc>, window_params = [{transform_indices = @transform_0, window_bounds = array<i64: 2, 16>}, {transform_indices = @transform_1, window_bounds = array<i64: 2, 4, 128>}, {pipeline_mode = #tpu.pipeline_mode<synchronous>, transform_indices = @transform_2, window_bounds = array<i64: 16, 32>}, {pipeline_mode = #tpu.pipeline_mode<synchronous>, transform_indices = @transform_3, window_bounds = array<i64: 4, 32>}, {pipeline_mode = #tpu.pipeline_mode<synchronous>, transform_indices = @transform_4, window_bounds = array<i64: 2, 32, 32>}, {pipeline_mode = #tpu.pipeline_mode<synchronous>, transform_indices = @transform_5, window_bounds = array<i64: 3, 3, 32>}, {pipeline_mode = #tpu.pipeline_mode<synchronous>, transform_indices = @transform_6, window_bounds = array<i64: 32, 128>}, {pipeline_mode = #tpu.pipeline_mode<synchronous>, transform_indices = @transform_7, window_bounds = array<i64: 1, 128>}, {transform_indices = @transform_8, window_bounds = array<i64: 2, 128>}]} {
    %c0_i32 = arith.constant 0 : i32
    %0 = arith.cmpi eq, %arg1, %c0_i32 : i32
    %1 = arith.extui %0 : i1 to i32
    %c0_i32_0 = arith.constant 0 : i32
    %2 = arith.cmpi ne, %1, %c0_i32_0 : i32
    scf.if %2 {
      %cst_8 = arith.constant 0.000000e+00 : f32
      %12 = vector.broadcast %cst_8 : f32 to vector<2x4xf32>
      %c0_9 = arith.constant 0 : index
      %c0_10 = arith.constant 0 : index
      %13 = vector.load %arg11[%c0_9, %c0_10] : memref<2x4xf32, #tpu.memory_space<vmem>>, vector<2x4xf32>
      tpu.vector_store %arg11[%c0_9, %c0_10], %12 {strides = array<i32>} : memref<2x4xf32, #tpu.memory_space<vmem>>, vector<2x4xf32>,
    } else {
    }
    %c0 = arith.constant 0 : index
    %c0_1 = arith.constant 0 : index
    %3 = vector.load %arg11[%c0, %c0_1] : memref<2x4xf32, #tpu.memory_space<vmem>>, vector<2x4xf32>
    %c0_2 = arith.constant 0 : index
    %c0_3 = arith.constant 0 : index
    %c0_4 = arith.constant 0 : index
    %4 = vector.load %arg3[%c0_2, %c0_3, %c0_4] : memref<2x4x128xbf16, #tpu.memory_space<vmem>>, vector<2x4x128xbf16>
    %5 = arith.extf %4 : vector<2x4x128xbf16> to vector<2x4x128xf32>
    %cst = arith.constant dense<0.000000e+00> : vector<2x4xf32>
    %6 = vector.multi_reduction <add>, %5, %cst [2] : vector<2x4x128xf32> to vector<2x4xf32>
    %7 = arith.addf %3, %6 : vector<2x4xf32>
    %c0_5 = arith.constant 0 : index
    %c0_6 = arith.constant 0 : index
    %8 = vector.load %arg11[%c0_5, %c0_6] : memref<2x4xf32, #tpu.memory_space<vmem>>, vector<2x4xf32>
    tpu.vector_store %arg11[%c0_5, %c0_6], %7 {strides = array<i32>} : memref<2x4xf32, #tpu.memory_space<vmem>>, vector<2x4xf32>,
    %c1_i32 = arith.constant 1 : i32
    %9 = arith.cmpi eq, %arg1, %c1_i32 : i32
    %10 = arith.extui %9 : i1 to i32
    %c0_i32_7 = arith.constant 0 : i32
    %11 = arith.cmpi ne, %10, %c0_i32_7 : i32
    scf.if %11 {
      %c0_8 = arith.constant 0 : index
      %c0_9 = arith.constant 0 : index
      %12 = vector.load %arg11[%c0_8, %c0_9] : memref<2x4xf32, #tpu.memory_space<vmem>>, vector<2x4xf32>
      %cst_10 = arith.constant 3.906250e-03 : f32
      %13 = vector.broadcast %cst_10 : f32 to vector<2x4xf32>
      %14 = arith.mulf %12, %13 : vector<2x4xf32>
      %15 = arith.truncf %14 : vector<2x4xf32> to vector<2x4xbf16>
      %c0_11 = arith.constant 0 : index
      %c0_12 = arith.constant 0 : index
      %16 = vector.load %arg2[%c0_11, %c0_12] : memref<2x16xbf16, #tpu.memory_space<vmem>>, vector<2x16xbf16>
      %c0_13 = arith.constant 0 : index
      %c0_14 = arith.constant 0 : index
      %17 = vector.load %arg4[%c0_13, %c0_14] : memref<16x32xbf16, #tpu.memory_space<vmem>>, vector<16x32xbf16>
      %cst_15 = arith.constant dense<0.000000e+00> : vector<2x32xf32>
      %18 = tpu.matmul %16, %17, %cst_15 {dimension_numbers = #tpu.dot_dimension_numbers<[1], [0], [0], [1], [0, 0, 1, 1], [], []>} : vector<2x16xbf16>, vector<16x32xbf16>, vector<2x32xf32> -> vector<2x32xf32>
      %c0_16 = arith.constant 0 : index
      %c0_17 = arith.constant 0 : index
      %19 = vector.load %arg5[%c0_16, %c0_17] : memref<4x32xbf16, #tpu.memory_space<vmem>>, vector<4x32xbf16>
      %cst_18 = arith.constant dense<0.000000e+00> : vector<2x32xf32>
      %20 = tpu.matmul %15, %19, %cst_18 {dimension_numbers = #tpu.dot_dimension_numbers<[1], [0], [0], [1], [0, 0, 1, 1], [], []>} : vector<2x4xbf16>, vector<4x32xbf16>, vector<2x32xf32> -> vector<2x32xf32>
      %21 = arith.addf %18, %20 : vector<2x32xf32>
      %c0_19 = arith.constant 0 : index
      %c0_20 = arith.constant 0 : index
      %c0_21 = arith.constant 0 : index
      %22 = vector.load %arg7[%c0_19, %c0_20, %c0_21] : memref<3x3x32xf32, #tpu.memory_space<vmem>>, vector<1x3x32xf32>
      %23 = vector.shape_cast %22 : vector<1x3x32xf32> to vector<3x32xf32>
      %24 = vector.extract_strided_slice %23 {offsets = [0, 0], sizes = [1, 32], strides = [1, 1]} : vector<3x32xf32> to vector<1x32xf32>
      %25 = vector.extract_strided_slice %23 {offsets = [1, 0], sizes = [1, 32], strides = [1, 1]} : vector<3x32xf32> to vector<1x32xf32>
      %26 = vector.extract_strided_slice %23 {offsets = [2, 0], sizes = [1, 32], strides = [1, 1]} : vector<3x32xf32> to vector<1x32xf32>
      %27 = vector.broadcast %24 : vector<1x32xf32> to vector<2x32xf32>
      %28 = arith.addf %21, %27 : vector<2x32xf32>
      %cst_22 = arith.constant dense<0.000000e+00> : vector<2xf32>
      %29 = vector.multi_reduction <add>, %28, %cst_22 [1] : vector<2x32xf32> to vector<2xf32>
      %30 = vector.shape_cast %29 : vector<2xf32> to vector<2x1xf32>
      %cst_23 = arith.constant 3.200000e+01 : f32
      %31 = vector.broadcast %cst_23 : f32 to vector<2x1xf32>
      %32 = arith.divf %30, %31 : vector<2x1xf32>
      %33 = vector.broadcast %32 : vector<2x1xf32> to vector<2x32xf32>
      %34 = arith.subf %28, %33 : vector<2x32xf32>
      %35 = arith.mulf %34, %34 : vector<2x32xf32>
      %cst_24 = arith.constant dense<0.000000e+00> : vector<2xf32>
      %36 = vector.multi_reduction <add>, %35, %cst_24 [1] : vector<2x32xf32> to vector<2xf32>
      %37 = vector.shape_cast %36 : vector<2xf32> to vector<2x1xf32>
      %cst_25 = arith.constant 3.200000e+01 : f32
      %38 = vector.broadcast %cst_25 : f32 to vector<2x1xf32>
      %39 = arith.divf %37, %38 : vector<2x1xf32>
      %cst_26 = arith.constant 9.99999974E-6 : f32
      %40 = vector.broadcast %cst_26 : f32 to vector<2x1xf32>
      %41 = arith.addf %39, %40 : vector<2x1xf32>
      %42 = math.rsqrt %41 : vector<2x1xf32>
      %43 = vector.broadcast %25 : vector<1x32xf32> to vector<2x32xf32>
      %44 = vector.broadcast %42 : vector<2x1xf32> to vector<2x32xf32>
      %45 = arith.mulf %43, %44 : vector<2x32xf32>
      %46 = vector.broadcast %32 : vector<2x1xf32> to vector<2x32xf32>
      %47 = arith.subf %28, %46 : vector<2x32xf32>
      %48 = arith.mulf %47, %45 : vector<2x32xf32>
      %49 = vector.broadcast %26 : vector<1x32xf32> to vector<2x32xf32>
      %50 = arith.addf %48, %49 : vector<2x32xf32>
      %cst_27 = arith.constant 0.000000e+00 : f32
      %51 = vector.broadcast %cst_27 : f32 to vector<2x32xf32>
      %52 = arith.maximumf %50, %51 : vector<2x32xf32>
      %53 = arith.truncf %52 : vector<2x32xf32> to vector<2x32xbf16>
      %c0_28 = arith.constant 0 : index
      %c0_29 = arith.constant 0 : index
      %c0_30 = arith.constant 0 : index
      %54 = vector.load %arg6[%c0_28, %c0_29, %c0_30] : memref<2x32x32xbf16, #tpu.memory_space<vmem>>, vector<1x32x32xbf16>
      %55 = vector.shape_cast %54 : vector<1x32x32xbf16> to vector<32x32xbf16>
      %cst_31 = arith.constant dense<0.000000e+00> : vector<2x32xf32>
      %56 = tpu.matmul %53, %55, %cst_31 {dimension_numbers = #tpu.dot_dimension_numbers<[1], [0], [0], [1], [0, 0, 1, 1], [], []>} : vector<2x32xbf16>, vector<32x32xbf16>, vector<2x32xf32> -> vector<2x32xf32>
      %c1 = arith.constant 1 : index
      %c0_32 = arith.constant 0 : index
      %c0_33 = arith.constant 0 : index
      %57 = vector.load %arg7[%c1, %c0_32, %c0_33] : memref<3x3x32xf32, #tpu.memory_space<vmem>>, vector<1x3x32xf32>
      %58 = vector.shape_cast %57 : vector<1x3x32xf32> to vector<3x32xf32>
      %59 = vector.extract_strided_slice %58 {offsets = [0, 0], sizes = [1, 32], strides = [1, 1]} : vector<3x32xf32> to vector<1x32xf32>
      %60 = vector.extract_strided_slice %58 {offsets = [1, 0], sizes = [1, 32], strides = [1, 1]} : vector<3x32xf32> to vector<1x32xf32>
      %61 = vector.extract_strided_slice %58 {offsets = [2, 0], sizes = [1, 32], strides = [1, 1]} : vector<3x32xf32> to vector<1x32xf32>
      %62 = vector.broadcast %59 : vector<1x32xf32> to vector<2x32xf32>
      %63 = arith.addf %56, %62 : vector<2x32xf32>
      %cst_34 = arith.constant dense<0.000000e+00> : vector<2xf32>
      %64 = vector.multi_reduction <add>, %63, %cst_34 [1] : vector<2x32xf32> to vector<2xf32>
      %65 = vector.shape_cast %64 : vector<2xf32> to vector<2x1xf32>
      %cst_35 = arith.constant 3.200000e+01 : f32
      %66 = vector.broadcast %cst_35 : f32 to vector<2x1xf32>
      %67 = arith.divf %65, %66 : vector<2x1xf32>
      %68 = vector.broadcast %67 : vector<2x1xf32> to vector<2x32xf32>
      %69 = arith.subf %63, %68 : vector<2x32xf32>
      %70 = arith.mulf %69, %69 : vector<2x32xf32>
      %cst_36 = arith.constant dense<0.000000e+00> : vector<2xf32>
      %71 = vector.multi_reduction <add>, %70, %cst_36 [1] : vector<2x32xf32> to vector<2xf32>
      %72 = vector.shape_cast %71 : vector<2xf32> to vector<2x1xf32>
      %cst_37 = arith.constant 3.200000e+01 : f32
      %73 = vector.broadcast %cst_37 : f32 to vector<2x1xf32>
      %74 = arith.divf %72, %73 : vector<2x1xf32>
      %cst_38 = arith.constant 9.99999974E-6 : f32
      %75 = vector.broadcast %cst_38 : f32 to vector<2x1xf32>
      %76 = arith.addf %74, %75 : vector<2x1xf32>
      %77 = math.rsqrt %76 : vector<2x1xf32>
      %78 = vector.broadcast %60 : vector<1x32xf32> to vector<2x32xf32>
      %79 = vector.broadcast %77 : vector<2x1xf32> to vector<2x32xf32>
      %80 = arith.mulf %78, %79 : vector<2x32xf32>
      %81 = vector.broadcast %67 : vector<2x1xf32> to vector<2x32xf32>
      %82 = arith.subf %63, %81 : vector<2x32xf32>
      %83 = arith.mulf %82, %80 : vector<2x32xf32>
      %84 = vector.broadcast %61 : vector<1x32xf32> to vector<2x32xf32>
      %85 = arith.addf %83, %84 : vector<2x32xf32>
      %cst_39 = arith.constant 0.000000e+00 : f32
      %86 = vector.broadcast %cst_39 : f32 to vector<2x32xf32>
      %87 = arith.maximumf %85, %86 : vector<2x32xf32>
      %88 = arith.truncf %87 : vector<2x32xf32> to vector<2x32xbf16>
      %c1_40 = arith.constant 1 : index
      %c0_41 = arith.constant 0 : index
      %c0_42 = arith.constant 0 : index
      %89 = vector.load %arg6[%c1_40, %c0_41, %c0_42] : memref<2x32x32xbf16, #tpu.memory_space<vmem>>, vector<1x32x32xbf16>
      %90 = vector.shape_cast %89 : vector<1x32x32xbf16> to vector<32x32xbf16>
      %cst_43 = arith.constant dense<0.000000e+00> : vector<2x32xf32>
      %91 = tpu.matmul %88, %90, %cst_43 {dimension_numbers = #tpu.dot_dimension_numbers<[1], [0], [0], [1], [0, 0, 1, 1], [], []>} : vector<2x32xbf16>, vector<32x32xbf16>, vector<2x32xf32> -> vector<2x32xf32>
      %c2 = arith.constant 2 : index
      %c0_44 = arith.constant 0 : index
      %c0_45 = arith.constant 0 : index
      %92 = vector.load %arg7[%c2, %c0_44, %c0_45] : memref<3x3x32xf32, #tpu.memory_space<vmem>>, vector<1x3x32xf32>
      %93 = vector.shape_cast %92 : vector<1x3x32xf32> to vector<3x32xf32>
      %94 = vector.extract_strided_slice %93 {offsets = [0, 0], sizes = [1, 32], strides = [1, 1]} : vector<3x32xf32> to vector<1x32xf32>
      %95 = vector.extract_strided_slice %93 {offsets = [1, 0], sizes = [1, 32], strides = [1, 1]} : vector<3x32xf32> to vector<1x32xf32>
      %96 = vector.extract_strided_slice %93 {offsets = [2, 0], sizes = [1, 32], strides = [1, 1]} : vector<3x32xf32> to vector<1x32xf32>
      %97 = vector.broadcast %94 : vector<1x32xf32> to vector<2x32xf32>
      %98 = arith.addf %91, %97 : vector<2x32xf32>
      %cst_46 = arith.constant dense<0.000000e+00> : vector<2xf32>
      %99 = vector.multi_reduction <add>, %98, %cst_46 [1] : vector<2x32xf32> to vector<2xf32>
      %100 = vector.shape_cast %99 : vector<2xf32> to vector<2x1xf32>
      %cst_47 = arith.constant 3.200000e+01 : f32
      %101 = vector.broadcast %cst_47 : f32 to vector<2x1xf32>
      %102 = arith.divf %100, %101 : vector<2x1xf32>
      %103 = vector.broadcast %102 : vector<2x1xf32> to vector<2x32xf32>
      %104 = arith.subf %98, %103 : vector<2x32xf32>
      %105 = arith.mulf %104, %104 : vector<2x32xf32>
      %cst_48 = arith.constant dense<0.000000e+00> : vector<2xf32>
      %106 = vector.multi_reduction <add>, %105, %cst_48 [1] : vector<2x32xf32> to vector<2xf32>
      %107 = vector.shape_cast %106 : vector<2xf32> to vector<2x1xf32>
      %cst_49 = arith.constant 3.200000e+01 : f32
      %108 = vector.broadcast %cst_49 : f32 to vector<2x1xf32>
      %109 = arith.divf %107, %108 : vector<2x1xf32>
      %cst_50 = arith.constant 9.99999974E-6 : f32
      %110 = vector.broadcast %cst_50 : f32 to vector<2x1xf32>
      %111 = arith.addf %109, %110 : vector<2x1xf32>
      %112 = math.rsqrt %111 : vector<2x1xf32>
      %113 = vector.broadcast %95 : vector<1x32xf32> to vector<2x32xf32>
      %114 = vector.broadcast %112 : vector<2x1xf32> to vector<2x32xf32>
      %115 = arith.mulf %113, %114 : vector<2x32xf32>
      %116 = vector.broadcast %102 : vector<2x1xf32> to vector<2x32xf32>
      %117 = arith.subf %98, %116 : vector<2x32xf32>
      %118 = arith.mulf %117, %115 : vector<2x32xf32>
      %119 = vector.broadcast %96 : vector<1x32xf32> to vector<2x32xf32>
      %120 = arith.addf %118, %119 : vector<2x32xf32>
      %cst_51 = arith.constant 0.000000e+00 : f32
      %121 = vector.broadcast %cst_51 : f32 to vector<2x32xf32>
      %122 = arith.maximumf %120, %121 : vector<2x32xf32>
      %123 = arith.truncf %122 : vector<2x32xf32> to vector<2x32xbf16>
      %c0_52 = arith.constant 0 : index
      %c0_53 = arith.constant 0 : index
      %124 = vector.load %arg8[%c0_52, %c0_53] : memref<32x128xbf16, #tpu.memory_space<vmem>>, vector<32x128xbf16>
      %cst_54 = arith.constant dense<0.000000e+00> : vector<2x128xf32>
      %125 = tpu.matmul %123, %124, %cst_54 {dimension_numbers = #tpu.dot_dimension_numbers<[1], [0], [0], [1], [0, 0, 1, 1], [], []>} : vector<2x32xbf16>, vector<32x128xbf16>, vector<2x128xf32> -> vector<2x128xf32>
      %c0_55 = arith.constant 0 : index
      %c0_56 = arith.constant 0 : index
      %126 = vector.load %arg9[%c0_55, %c0_56] : memref<1x128xf32, #tpu.memory_space<vmem>>, vector<1x128xf32>
      %127 = vector.broadcast %126 : vector<1x128xf32> to vector<2x128xf32>
      %128 = arith.addf %125, %127 : vector<2x128xf32>
      %c0_57 = arith.constant 0 : index
      %c0_58 = arith.constant 0 : index
      %129 = vector.load %arg10[%c0_57, %c0_58] : memref<2x128xf32, #tpu.memory_space<vmem>>, vector<2x128xf32>
      tpu.vector_store %arg10[%c0_57, %c0_58], %128 {strides = array<i32>} : memref<2x128xf32, #tpu.memory_space<vmem>>, vector<2x128xf32>,
    } else {
    }
    return
  }
  func.func @transform_0(%arg0: i32, %arg1: i32) -> (i32, i32) {
    %c0_i32 = arith.constant 0 : i32
    %c0_i32_0 = arith.constant 0 : i32
    return %arg0, %c0_i32 : i32, i32
  }
  func.func @transform_1(%arg0: i32, %arg1: i32) -> (i32, i32, i32) {
    %c0_i32 = arith.constant 0 : i32
    %c0_i32_0 = arith.constant 0 : i32
    return %arg0, %c0_i32, %arg1 : i32, i32, i32
  }
  func.func @transform_2(%arg0: i32, %arg1: i32) -> (i32, i32) {
    %c0_i32 = arith.constant 0 : i32
    %c0_i32_0 = arith.constant 0 : i32
    %c0_i32_1 = arith.constant 0 : i32
    return %c0_i32, %c0_i32_0 : i32, i32
  }
  func.func @transform_3(%arg0: i32, %arg1: i32) -> (i32, i32) {
    %c0_i32 = arith.constant 0 : i32
    %c0_i32_0 = arith.constant 0 : i32
    %c0_i32_1 = arith.constant 0 : i32
    return %c0_i32, %c0_i32_0 : i32, i32
  }
  func.func @transform_4(%arg0: i32, %arg1: i32) -> (i32, i32, i32) {
    %c0_i32 = arith.constant 0 : i32
    %c0_i32_0 = arith.constant 0 : i32
    %c0_i32_1 = arith.constant 0 : i32
    %c0_i32_2 = arith.constant 0 : i32
    return %c0_i32, %c0_i32_0, %c0_i32_1 : i32, i32, i32
  }
  func.func @transform_5(%arg0: i32, %arg1: i32) -> (i32, i32, i32) {
    %c0_i32 = arith.constant 0 : i32
    %c0_i32_0 = arith.constant 0 : i32
    %c0_i32_1 = arith.constant 0 : i32
    %c0_i32_2 = arith.constant 0 : i32
    return %c0_i32, %c0_i32_0, %c0_i32_1 : i32, i32, i32
  }
  func.func @transform_6(%arg0: i32, %arg1: i32) -> (i32, i32) {
    %c0_i32 = arith.constant 0 : i32
    %c0_i32_0 = arith.constant 0 : i32
    %c0_i32_1 = arith.constant 0 : i32
    return %c0_i32, %c0_i32_0 : i32, i32
  }
  func.func @transform_7(%arg0: i32, %arg1: i32) -> (i32, i32) {
    %c0_i32 = arith.constant 0 : i32
    %c0_i32_0 = arith.constant 0 : i32
    %c0_i32_1 = arith.constant 0 : i32
    return %c0_i32, %c0_i32_0 : i32, i32
  }
  func.func @transform_8(%arg0: i32, %arg1: i32) -> (i32, i32) {
    %c0_i32 = arith.constant 0 : i32
    %c0_i32_0 = arith.constant 0 : i32
    return %arg0, %c0_i32 : i32, i32
  }
}

module attributes {stable_mosaic.version = 11 : i64} {
  func.func @_ffn_kernel(%arg0: i32, %arg1: i32, %arg2: memref<2x16xbf16, #tpu.memory_space<vmem>>, %arg3: memref<2x4x128xbf16, #tpu.memory_space<vmem>>, %arg4: memref<16x32xbf16, #tpu.memory_space<vmem>>, %arg5: memref<4x32xbf16, #tpu.memory_space<vmem>>, %arg6: memref<2x32x32xbf16, #tpu.memory_space<vmem>>, %arg7: memref<3x3x32xf32, #tpu.memory_space<vmem>>, %arg8: memref<32x128xbf16, #tpu.memory_space<vmem>>, %arg9: memref<1x128xf32, #tpu.memory_space<vmem>>, %arg10: memref<2x128xf32, #tpu.memory_space<vmem>>, %arg11: memref<2x4xf32, #tpu.memory_space<vmem>>) attributes {dimension_semantics = [#tpu.dimension_semantics<parallel>, #tpu.dimension_semantics<arbitrary>], iteration_bounds = array<i64: 1, 2>, scalar_prefetch = 0 : i64, scratch_operands = 1 : i64, tpu.core_type = #tpu.core_type<tc>, window_params = [{transform_indices = @transform_0, window_bounds = array<i64: 2, 16>}, {transform_indices = @transform_1, window_bounds = array<i64: 2, 4, 128>}, {pipeline_mode = #tpu.pipeline_mode<synchronous>, transform_indices = @transform_2, window_bounds = array<i64: 16, 32>}, {pipeline_mode = #tpu.pipeline_mode<synchronous>, transform_indices = @transform_3, window_bounds = array<i64: 4, 32>}, {pipeline_mode = #tpu.pipeline_mode<synchronous>, transform_indices = @transform_4, window_bounds = array<i64: 2, 32, 32>}, {pipeline_mode = #tpu.pipeline_mode<synchronous>, transform_indices = @transform_5, window_bounds = array<i64: 3, 3, 32>}, {pipeline_mode = #tpu.pipeline_mode<synchronous>, transform_indices = @transform_6, window_bounds = array<i64: 32, 128>}, {pipeline_mode = #tpu.pipeline_mode<synchronous>, transform_indices = @transform_7, window_bounds = array<i64: 1, 128>}, {transform_indices = @transform_8, window_bounds = array<i64: 2, 128>}]} {
    %c0_i32 = arith.constant 0 : i32
    %0 = arith.cmpi eq, %arg1, %c0_i32 : i32
    %1 = arith.extui %0 : i1 to i32
    %c0_i32_0 = arith.constant 0 : i32
    %2 = arith.cmpi ne, %1, %c0_i32_0 : i32
    scf.if %2 {
      %cst_8 = arith.constant 0.000000e+00 : f32
      %12 = vector.broadcast %cst_8 : f32 to vector<2x4xf32>
      %c0_9 = arith.constant 0 : index
      %c0_10 = arith.constant 0 : index
      %13 = vector.load %arg11[%c0_9, %c0_10] : memref<2x4xf32, #tpu.memory_space<vmem>>, vector<2x4xf32>
      tpu.vector_store %arg11[%c0_9, %c0_10], %12 {strides = array<i32>} : memref<2x4xf32, #tpu.memory_space<vmem>>, vector<2x4xf32>,
    } else {
    }
    %c0 = arith.constant 0 : index
    %c0_1 = arith.constant 0 : index
    %3 = vector.load %arg11[%c0, %c0_1] : memref<2x4xf32, #tpu.memory_space<vmem>>, vector<2x4xf32>
    %c0_2 = arith.constant 0 : index
    %c0_3 = arith.constant 0 : index
    %c0_4 = arith.constant 0 : index
    %4 = vector.load %arg3[%c0_2, %c0_3, %c0_4] : memref<2x4x128xbf16, #tpu.memory_space<vmem>>, vector<2x4x128xbf16>
    %5 = arith.extf %4 : vector<2x4x128xbf16> to vector<2x4x128xf32>
    %cst = arith.constant dense<0.000000e+00> : vector<2x4xf32>
    %6 = vector.multi_reduction <add>, %5, %cst [2] : vector<2x4x128xf32> to vector<2x4xf32>
    %7 = arith.addf %3, %6 : vector<2x4xf32>
    %c0_5 = arith.constant 0 : index
    %c0_6 = arith.constant 0 : index
    %8 = vector.load %arg11[%c0_5, %c0_6] : memref<2x4xf32, #tpu.memory_space<vmem>>, vector<2x4xf32>
    tpu.vector_store %arg11[%c0_5, %c0_6], %7 {strides = array<i32>} : memref<2x4xf32, #tpu.memory_space<vmem>>, vector<2x4xf32>,
    %c1_i32 = arith.constant 1 : i32
    %9 = arith.cmpi eq, %arg1, %c1_i32 : i32
    %10 = arith.extui %9 : i1 to i32
    %c0_i32_7 = arith.constant 0 : i32
    %11 = arith.cmpi ne, %10, %c0_i32_7 : i32
    scf.if %11 {
      %c0_8 = arith.constant 0 : index
      %c0_9 = arith.constant 0 : index
      %12 = vector.load %arg11[%c0_8, %c0_9] : memref<2x4xf32, #tpu.memory_space<vmem>>, vector<2x4xf32>
      %cst_10 = arith.constant 3.906250e-03 : f32
      %13 = vector.broadcast %cst_10 : f32 to vector<2x4xf32>
      %14 = arith.mulf %12, %13 : vector<2x4xf32>
      %15 = arith.truncf %14 : vector<2x4xf32> to vector<2x4xbf16>
      %c0_11 = arith.constant 0 : index
      %c0_12 = arith.constant 0 : index
      %16 = vector.load %arg2[%c0_11, %c0_12] : memref<2x16xbf16, #tpu.memory_space<vmem>>, vector<2x16xbf16>
      %c0_13 = arith.constant 0 : index
      %c0_14 = arith.constant 0 : index
      %17 = vector.load %arg4[%c0_13, %c0_14] : memref<16x32xbf16, #tpu.memory_space<vmem>>, vector<16x32xbf16>
      %cst_15 = arith.constant dense<0.000000e+00> : vector<2x32xf32>
      %18 = tpu.matmul %16, %17, %cst_15 {dimension_numbers = #tpu.dot_dimension_numbers<[1], [0], [0], [1], [0, 0, 1, 1], [], []>} : vector<2x16xbf16>, vector<16x32xbf16>, vector<2x32xf32> -> vector<2x32xf32>
      %c0_16 = arith.constant 0 : index
      %c0_17 = arith.constant 0 : index
      %19 = vector.load %arg5[%c0_16, %c0_17] : memref<4x32xbf16, #tpu.memory_space<vmem>>, vector<4x32xbf16>
      %cst_18 = arith.constant dense<0.000000e+00> : vector<2x32xf32>
      %20 = tpu.matmul %15, %19, %cst_18 {dimension_numbers = #tpu.dot_dimension_numbers<[1], [0], [0], [1], [0, 0, 1, 1], [], []>} : vector<2x4xbf16>, vector<4x32xbf16>, vector<2x32xf32> -> vector<2x32xf32>
      %21 = arith.addf %18, %20 : vector<2x32xf32>
      %c0_19 = arith.constant 0 : index
      %c0_20 = arith.constant 0 : index
      %c0_21 = arith.constant 0 : index
      %22 = vector.load %arg7[%c0_19, %c0_20, %c0_21] : memref<3x3x32xf32, #tpu.memory_space<vmem>>, vector<1x3x32xf32>
      %23 = vector.shape_cast %22 : vector<1x3x32xf32> to vector<3x32xf32>
      %24 = vector.extract_strided_slice %23 {offsets = [0, 0], sizes = [1, 32], strides = [1, 1]} : vector<3x32xf32> to vector<1x32xf32>
      %25 = vector.extract_strided_slice %23 {offsets = [1, 0], sizes = [1, 32], strides = [1, 1]} : vector<3x32xf32> to vector<1x32xf32>
      %26 = vector.extract_strided_slice %23 {offsets = [2, 0], sizes = [1, 32], strides = [1, 1]} : vector<3x32xf32> to vector<1x32xf32>
      %27 = vector.broadcast %24 : vector<1x32xf32> to vector<2x32xf32>
      %28 = arith.addf %21, %27 : vector<2x32xf32>
      %cst_22 = arith.constant dense<0.000000e+00> : vector<2xf32>
      %29 = vector.multi_reduction <add>, %28, %cst_22 [1] : vector<2x32xf32> to vector<2xf32>
      %30 = vector.shape_cast %29 : vector<2xf32> to vector<2x1xf32>
      %cst_23 = arith.constant 3.200000e+01 : f32
      %31 = vector.broadcast %cst_23 : f32 to vector<2x1xf32>
      %32 = arith.divf %30, %31 : vector<2x1xf32>
      %33 = vector.broadcast %32 : vector<2x1xf32> to vector<2x32xf32>
      %34 = arith.subf %28, %33 : vector<2x32xf32>
      %35 = arith.mulf %34, %34 : vector<2x32xf32>
      %cst_24 = arith.constant dense<0.000000e+00> : vector<2xf32>
      %36 = vector.multi_reduction <add>, %35, %cst_24 [1] : vector<2x32xf32> to vector<2xf32>
      %37 = vector.shape_cast %36 : vector<2xf32> to vector<2x1xf32>
      %cst_25 = arith.constant 3.200000e+01 : f32
      %38 = vector.broadcast %cst_25 : f32 to vector<2x1xf32>
      %39 = arith.divf %37, %38 : vector<2x1xf32>
      %cst_26 = arith.constant 9.99999974E-6 : f32
      %40 = vector.broadcast %cst_26 : f32 to vector<2x1xf32>
      %41 = arith.addf %39, %40 : vector<2x1xf32>
      %42 = math.rsqrt %41 : vector<2x1xf32>
      %43 = vector.broadcast %25 : vector<1x32xf32> to vector<2x32xf32>
      %44 = vector.broadcast %42 : vector<2x1xf32> to vector<2x32xf32>
      %45 = arith.mulf %43, %44 : vector<2x32xf32>
      %46 = vector.broadcast %32 : vector<2x1xf32> to vector<2x32xf32>
      %47 = arith.subf %28, %46 : vector<2x32xf32>
      %48 = arith.mulf %47, %45 : vector<2x32xf32>
      %49 = vector.broadcast %26 : vector<1x32xf32> to vector<2x32xf32>
      %50 = arith.addf %48, %49 : vector<2x32xf32>
      %cst_27 = arith.constant 0.000000e+00 : f32
      %51 = vector.broadcast %cst_27 : f32 to vector<2x32xf32>
      %52 = arith.maximumf %50, %51 : vector<2x32xf32>
      %53 = arith.truncf %52 : vector<2x32xf32> to vector<2x32xbf16>
      %c0_28 = arith.constant 0 : index
      %c0_29 = arith.constant 0 : index
      %c0_30 = arith.constant 0 : index
      %54 = vector.load %arg6[%c0_28, %c0_29, %c0_30] : memref<2x32x32xbf16, #tpu.memory_space<vmem>>, vector<1x32x32xbf16>
      %55 = vector.shape_cast %54 : vector<1x32x32xbf16> to vector<32x32xbf16>
      %cst_31 = arith.constant dense<0.000000e+00> : vector<2x32xf32>
      %56 = tpu.matmul %53, %55, %cst_31 {dimension_numbers = #tpu.dot_dimension_numbers<[1], [0], [0], [1], [0, 0, 1, 1], [], []>} : vector<2x32xbf16>, vector<32x32xbf16>, vector<2x32xf32> -> vector<2x32xf32>
      %c1 = arith.constant 1 : index
      %c0_32 = arith.constant 0 : index
      %c0_33 = arith.constant 0 : index
      %57 = vector.load %arg7[%c1, %c0_32, %c0_33] : memref<3x3x32xf32, #tpu.memory_space<vmem>>, vector<1x3x32xf32>
      %58 = vector.shape_cast %57 : vector<1x3x32xf32> to vector<3x32xf32>
      %59 = vector.extract_strided_slice %58 {offsets = [0, 0], sizes = [1, 32], strides = [1, 1]} : vector<3x32xf32> to vector<1x32xf32>
      %60 = vector.extract_strided_slice %58 {offsets = [1, 0], sizes = [1, 32], strides = [1, 1]} : vector<3x32xf32> to vector<1x32xf32>
      %61 = vector.extract_strided_slice %58 {offsets = [2, 0], sizes = [1, 32], strides = [1, 1]} : vector<3x32xf32> to vector<1x32xf32>
      %62 = vector.broadcast %59 : vector<1x32xf32> to vector<2x32xf32>
      %63 = arith.addf %56, %62 : vector<2x32xf32>
      %cst_34 = arith.constant dense<0.000000e+00> : vector<2xf32>
      %64 = vector.multi_reduction <add>, %63, %cst_34 [1] : vector<2x32xf32> to vector<2xf32>
      %65 = vector.shape_cast %64 : vector<2xf32> to vector<2x1xf32>
      %cst_35 = arith.constant 3.200000e+01 : f32
      %66 = vector.broadcast %cst_35 : f32 to vector<2x1xf32>
      %67 = arith.divf %65, %66 : vector<2x1xf32>
      %68 = vector.broadcast %67 : vector<2x1xf32> to vector<2x32xf32>
      %69 = arith.subf %63, %68 : vector<2x32xf32>
      %70 = arith.mulf %69, %69 : vector<2x32xf32>
      %cst_36 = arith.constant dense<0.000000e+00> : vector<2xf32>
      %71 = vector.multi_reduction <add>, %70, %cst_36 [1] : vector<2x32xf32> to vector<2xf32>
      %72 = vector.shape_cast %71 : vector<2xf32> to vector<2x1xf32>
      %cst_37 = arith.constant 3.200000e+01 : f32
      %73 = vector.broadcast %cst_37 : f32 to vector<2x1xf32>
      %74 = arith.divf %72, %73 : vector<2x1xf32>
      %cst_38 = arith.constant 9.99999974E-6 : f32
      %75 = vector.broadcast %cst_38 : f32 to vector<2x1xf32>
      %76 = arith.addf %74, %75 : vector<2x1xf32>
      %77 = math.rsqrt %76 : vector<2x1xf32>
      %78 = vector.broadcast %60 : vector<1x32xf32> to vector<2x32xf32>
      %79 = vector.broadcast %77 : vector<2x1xf32> to vector<2x32xf32>
      %80 = arith.mulf %78, %79 : vector<2x32xf32>
      %81 = vector.broadcast %67 : vector<2x1xf32> to vector<2x32xf32>
      %82 = arith.subf %63, %81 : vector<2x32xf32>
      %83 = arith.mulf %82, %80 : vector<2x32xf32>
      %84 = vector.broadcast %61 : vector<1x32xf32> to vector<2x32xf32>
      %85 = arith.addf %83, %84 : vector<2x32xf32>
      %cst_39 = arith.constant 0.000000e+00 : f32
      %86 = vector.broadcast %cst_39 : f32 to vector<2x32xf32>
      %87 = arith.maximumf %85, %86 : vector<2x32xf32>
      %88 = arith.truncf %87 : vector<2x32xf32> to vector<2x32xbf16>
      %c1_40 = arith.constant 1 : index
      %c0_41 = arith.constant 0 : index
      %c0_42 = arith.constant 0 : index
      %89 = vector.load %arg6[%c1_40, %c0_41, %c0_42] : memref<2x32x32xbf16, #tpu.memory_space<vmem>>, vector<1x32x32xbf16>
      %90 = vector.shape_cast %89 : vector<1x32x32xbf16> to vector<32x32xbf16>
      %cst_43 = arith.constant dense<0.000000e+00> : vector<2x32xf32>
      %91 = tpu.matmul %88, %90, %cst_43 {dimension_numbers = #tpu.dot_dimension_numbers<[1], [0], [0], [1], [0, 0, 1, 1], [], []>} : vector<2x32xbf16>, vector<32x32xbf16>, vector<2x32xf32> -> vector<2x32xf32>
      %c2 = arith.constant 2 : index
      %c0_44 = arith.constant 0 : index
      %c0_45 = arith.constant 0 : index
      %92 = vector.load %arg7[%c2, %c0_44, %c0_45] : memref<3x3x32xf32, #tpu.memory_space<vmem>>, vector<1x3x32xf32>
      %93 = vector.shape_cast %92 : vector<1x3x32xf32> to vector<3x32xf32>
      %94 = vector.extract_strided_slice %93 {offsets = [0, 0], sizes = [1, 32], strides = [1, 1]} : vector<3x32xf32> to vector<1x32xf32>
      %95 = vector.extract_strided_slice %93 {offsets = [1, 0], sizes = [1, 32], strides = [1, 1]} : vector<3x32xf32> to vector<1x32xf32>
      %96 = vector.extract_strided_slice %93 {offsets = [2, 0], sizes = [1, 32], strides = [1, 1]} : vector<3x32xf32> to vector<1x32xf32>
      %97 = vector.broadcast %94 : vector<1x32xf32> to vector<2x32xf32>
      %98 = arith.addf %91, %97 : vector<2x32xf32>
      %cst_46 = arith.constant dense<0.000000e+00> : vector<2xf32>
      %99 = vector.multi_reduction <add>, %98, %cst_46 [1] : vector<2x32xf32> to vector<2xf32>
      %100 = vector.shape_cast %99 : vector<2xf32> to vector<2x1xf32>
      %cst_47 = arith.constant 3.200000e+01 : f32
      %101 = vector.broadcast %cst_47 : f32 to vector<2x1xf32>
      %102 = arith.divf %100, %101 : vector<2x1xf32>
      %103 = vector.broadcast %102 : vector<2x1xf32> to vector<2x32xf32>
      %104 = arith.subf %98, %103 : vector<2x32xf32>
      %105 = arith.mulf %104, %104 : vector<2x32xf32>
      %cst_48 = arith.constant dense<0.000000e+00> : vector<2xf32>
      %106 = vector.multi_reduction <add>, %105, %cst_48 [1] : vector<2x32xf32> to vector<2xf32>
      %107 = vector.shape_cast %106 : vector<2xf32> to vector<2x1xf32>
      %cst_49 = arith.constant 3.200000e+01 : f32
      %108 = vector.broadcast %cst_49 : f32 to vector<2x1xf32>
      %109 = arith.divf %107, %108 : vector<2x1xf32>
      %cst_50 = arith.constant 9.99999974E-6 : f32
      %110 = vector.broadcast %cst_50 : f32 to vector<2x1xf32>
      %111 = arith.addf %109, %110 : vector<2x1xf32>
      %112 = math.rsqrt %111 : vector<2x1xf32>
      %113 = vector.broadcast %95 : vector<1x32xf32> to vector<2x32xf32>
      %114 = vector.broadcast %112 : vector<2x1xf32> to vector<2x32xf32>
      %115 = arith.mulf %113, %114 : vector<2x32xf32>
      %116 = vector.broadcast %102 : vector<2x1xf32> to vector<2x32xf32>
      %117 = arith.subf %98, %116 : vector<2x32xf32>
      %118 = arith.mulf %117, %115 : vector<2x32xf32>
      %119 = vector.broadcast %96 : vector<1x32xf32> to vector<2x32xf32>
      %120 = arith.addf %118, %119 : vector<2x32xf32>
      %cst_51 = arith.constant 0.000000e+00 : f32
      %121 = vector.broadcast %cst_51 : f32 to vector<2x32xf32>
      %122 = arith.maximumf %120, %121 : vector<2x32xf32>
      %123 = arith.truncf %122 : vector<2x32xf32> to vector<2x32xbf16>
      %c0_52 = arith.constant 0 : index
      %c0_53 = arith.constant 0 : index
      %124 = vector.load %arg8[%c0_52, %c0_53] : memref<32x128xbf16, #tpu.memory_space<vmem>>, vector<32x128xbf16>
      %cst_54 = arith.constant dense<0.000000e+00> : vector<2x128xf32>
      %125 = tpu.matmul %123, %124, %cst_54 {dimension_numbers = #tpu.dot_dimension_numbers<[1], [0], [0], [1], [0, 0, 1, 1], [], []>} : vector<2x32xbf16>, vector<32x128xbf16>, vector<2x128xf32> -> vector<2x128xf32>
      %c0_55 = arith.constant 0 : index
      %c0_56 = arith.constant 0 : index
      %126 = vector.load %arg9[%c0_55, %c0_56] : memref<1x128xf32, #tpu.memory_space<vmem>>, vector<1x128xf32>
      %127 = vector.broadcast %126 : vector<1x128xf32> to vector<2x128xf32>
      %128 = arith.addf %125, %127 : vector<2x128xf32>
      %c0_57 = arith.constant 0 : index
      %c0_58 = arith.constant 0 : index
      %129 = vector.load %arg10[%c0_57, %c0_58] : memref<2x128xf32, #tpu.memory_space<vmem>>, vector<2x128xf32>
      tpu.vector_store %arg10[%c0_57, %c0_58], %128 {strides = array<i32>} : memref<2x128xf32, #tpu.memory_space<vmem>>, vector<2x128xf32>,
    } else {
    }
    return
  }
  func.func @transform_0(%arg0: i32, %arg1: i32) -> (i32, i32) {
    %c0_i32 = arith.constant 0 : i32
    %c0_i32_0 = arith.constant 0 : i32
    return %arg0, %c0_i32 : i32, i32
  }
  func.func @transform_1(%arg0: i32, %arg1: i32) -> (i32, i32, i32) {
    %c0_i32 = arith.constant 0 : i32
    %c0_i32_0 = arith.constant 0 : i32
    return %arg0, %c0_i32, %arg1 : i32, i32, i32
  }
  func.func @transform_2(%arg0: i32, %arg1: i32) -> (i32, i32) {
    %c0_i32 = arith.constant 0 : i32
    %c0_i32_0 = arith.constant 0 : i32
    %c0_i32_1 = arith.constant 0 : i32
    return %c0_i32, %c0_i32_0 : i32, i32
  }
  func.func @transform_3(%arg0: i32, %arg1: i32) -> (i32, i32) {
    %c0_i32 = arith.constant 0 : i32
    %c0_i32_0 = arith.constant 0 : i32
    %c0_i32_1 = arith.constant 0 : i32
    return %c0_i32, %c0_i32_0 : i32, i32
  }
  func.func @transform_4(%arg0: i32, %arg1: i32) -> (i32, i32, i32) {
    %c0_i32 = arith.constant 0 : i32
    %c0_i32_0 = arith.constant 0 : i32
    %c0_i32_1 = arith.constant 0 : i32
    %c0_i32_2 = arith.constant 0 : i32
    return %c0_i32, %c0_i32_0, %c0_i32_1 : i32, i32, i32
  }
  func.func @transform_5(%arg0: i32, %arg1: i32) -> (i32, i32, i32) {
    %c0_i32 = arith.constant 0 : i32
    %c0_i32_0 = arith.constant 0 : i32
    %c0_i32_1 = arith.constant 0 : i32
    %c0_i32_2 = arith.constant 0 : i32
    return %c0_i32, %c0_i32_0, %c0_i32_1 : i32, i32, i32
  }
  func.func @transform_6(%arg0: i32, %arg1: i32) -> (i32, i32) {
    %c0_i32 = arith.constant 0 : i32
    %c0_i32_0 = arith.constant 0 : i32
    %c0_i32_1 = arith.constant 0 : i32
    return %c0_i32, %c0_i32_0 : i32, i32
  }
  func.func @transform_7(%arg0: i32, %arg1: i32) -> (i32, i32) {
    %c0_i32 = arith.constant 0 : i32
    %c0_i32_0 = arith.constant 0 : i32
    %c0_i32_1 = arith.constant 0 : i32
    return %c0_i32, %c0_i32_0 : i32, i32
  }
  func.func @transform_8(%arg0: i32, %arg1: i32) -> (i32, i32) {
    %c0_i32 = arith.constant 0 : i32
    %c0_i32_0 = arith.constant 0 : i32
    return %arg0, %c0_i32 : i32, i32
  }
}

</mosaic_0001>

<llo_original>
// kernel: tpu_custom_call.1
$region0: #{tpu_custom_call.1}
  #allocation0 [shape = 'u32[]', space=smem, size = 0x4, offset = 0x4, fixed_abs, tag = 'smem constant byte address 0x4 - core index']
  #allocation1 [shape = 'u32[72,128]{1,0:T(1,128)}', space=vmem, size = 0x9000, scoped, tag = 'internal scratch']
  #allocation2 [shape = 'f32[2,4]{1,0:T(2,128)}', space=vmem, size = 0x400, scoped, tag = 'scratch operand']
  %s0 = inlined_call_operand.hbm [shape: bf16[2,16], index: 0, kind: input, shape index: {}]
  %s1 = inlined_call_operand.hbm [shape: bf16[2,4,256], index: 1, kind: input, shape index: {}]
  %s2 = inlined_call_operand.hbm [shape: bf16[16,32], index: 2, kind: input, shape index: {}]
  %s3 = inlined_call_operand.vmem [shape: bf16[4,32], index: 3, kind: input, shape index: {}]
  %s4 = inlined_call_operand.hbm [shape: bf16[2,32,32], index: 4, kind: input, shape index: {}]
  %s5 = inlined_call_operand.hbm [shape: f32[3,3,32], index: 5, kind: input, shape index: {}]
  %s6 = inlined_call_operand.hbm [shape: bf16[32,128], index: 6, kind: input, shape index: {}]
  %s7 = inlined_call_operand.vmem [shape: f32[1,128], index: 7, kind: input, shape index: {}]
  %s8 = inlined_call_operand.hbm [shape: f32[2,128], index: 8, kind: output, shape index: {}]
  %s9 = sld [smem:[#allocation0]]
  $region97: #{tpu_custom_call.1} parent=0
    _
  %s11 = ssub.s32 1, %s9
  %s12 = scalar_select 0, %s11, %s9
  $region1: #{tpu_custom_call.1} parent=0
    #allocation3 [shape = 'u8[512]{0}', space=vmem, size = 0x400, scoped, tag = 'input window, operand 0, single buffered']
    #allocation4 [shape = 's32[2]{0}', space=sflag, size = 0x8, scoped, tag = 'scoped memory for tpu_custom_call.1']
    #allocation5 [shape = 's32[2]{0}', space=sflag, size = 0x8, scoped, tag = 'scoped memory for tpu_custom_call.1']
    #allocation6 [shape = 'u8[4096]{0}', space=vmem, size = 0x1000, scoped, tag = 'input window, operand 1']
    #allocation7 [shape = 's32[2]{0}', space=sflag, size = 0x8, scoped, tag = 'scoped memory for tpu_custom_call.1']
    #allocation8 [shape = 'u8[4096]{0}', space=vmem, size = 0x1000, scoped, tag = 'input window, operand 2, single buffered']
    #allocation9 [shape = 'u8[16384]{0}', space=vmem, size = 0x4000, scoped, tag = 'input window, operand 4, single buffered']
    #allocation10 [shape = 's32[1]{0}', space=sflag, size = 0x4, scoped, tag = 'scoped memory for tpu_custom_call.1']
    #allocation11 [shape = 'u8[6144]{0}', space=vmem, size = 0x1800, scoped, tag = 'input window, operand 5, single buffered']
    #allocation12 [shape = 'u8[8192]{0}', space=vmem, size = 0x2000, scoped, tag = 'input window, operand 6, single buffered']
    #allocation13 [shape = 's32[1]{0}', space=sflag, size = 0x4, scoped, tag = 'scoped memory for tpu_custom_call.1']
    #allocation14 [shape = 'u8[1024]{0}', space=vmem, size = 0x400, scoped, tag = 'output window, operand 0, single buffered']
    %13 = vsyncpa [#allocation4], 0
    %14 = vsyncpa [#allocation7], 0
    %s15 = scalar_lea.sflag [#allocation7], 1
    %16 = vsyncpa %s15, 0
    %17 = vsyncpa [#allocation10], 0
    %18 = vsyncpa [#allocation13], 0
    %19 = vsyncpa [#allocation5], 0
    loop: start=0, step=1, limit=4
    $region2: #{tpu_custom_call.1} parent=1 // loop_pre_header
      _
    $region3: #{tpu_custom_call.1} parent=1 // loop_header
      %s21 = sphi 0, %s25
      %p22 = scmp.ge.s32.totalorder %s21, 4
      %s28 = sphi 0, %s40
      %s29 = sphi 0, %s36
      %s30 = sphi 0, %s28
      %s31 = sphi 0, %s29
      %s32 = sphi 0, %s30
      %s33 = sphi 0, %s31
      %s43 = sphi 0, %s45
      %s46 = sphi 0, %s43
      %s47 = sphi 0, %s46
      %s63 = sphi 0, %s47
      %s71 = sphi 0, %s73
      %s74 = sphi 0, %s71
      %s75 = sphi 0, %s74
      %s91 = sphi 0, %s75
      %s95 = sphi 0, %s95
      %s97 = sphi 0, %s95
      %s98 = sphi 0, %s97
      %s112 = sphi 0, %s98
      %s116 = sphi 0, %s116
      %s118 = sphi 0, %s116
      %s119 = sphi 0, %s118
      %s133 = sphi 0, %s119
      %s137 = sphi 0, %s137
      %s139 = sphi 0, %s137
      %s140 = sphi 0, %s139
      %s154 = sphi 0, %s140
      %s158 = sphi 0, %s158
      %s160 = sphi 0, %s158
      %s161 = sphi 0, %s160
      %s175 = sphi 0, %s161
      %s179 = sphi 0, %s179
      %s181 = sphi 0, %s179
      %s182 = sphi 0, %s181
      %s196 = sphi 0, %s182
      %s200 = sphi 0, %s200
      %s202 = sphi 0, %s200
      %s203 = sphi 0, %s202
      %s217 = sphi 0, %s203
      %s223 = sphi 0, %s225
      %s226 = sphi 0, %s223
      %s227 = sphi 0, %s226
      %s243 = sphi 0, %s227
    $region4: #{tpu_custom_call.1} parent=1 // loop_header_branch
      %24 = sbr.rel (%p22) target = $region8
    $region5: #{tpu_custom_call.1} parent=1 // loop_body
      %s26 = ssub.s32 %s21, 1
      %s27 = ssub.s32 %s21, 2
      %s34 = sadd.s32 1, %s29
      %p35 = scmp.ge.s32.totalorder %s34, 2
      %s36 = scalar_select %p35, 0, %s34
      %s37 = sadd.s32 1, %s28
      %s38 = scalar_select %p35, %s37, %s28
      %p39 = scmp.ge.s32.totalorder %s38, 1
      %s40 = scalar_select %p39, 0, %s38
      %s41 = ssub.s32 %s28, %s40
      %p42 = scmp.eq.s32.totalorder %s41, 0
      %s44 = sadd.s32 %s43, 1
      %s45 = scalar_select %p42, %s43, %s44
      %p48 = pneg %p42
      %p49 = scmp.eq.s32.totalorder %s21, 1
      %p50 = por %p48, %p49
      %p51 = scmp.ne.s32.totalorder %s43, %s46
      %p52 = scmp.eq.s32.totalorder %s21, 0
      %p53 = por %p51, %p52
      %p54 = scmp.ne.s32.totalorder %s43, %s46
      %p55 = scmp.eq.s32.totalorder %s26, 1
      %p56 = por %p54, %p55
      %p57 = scmp.ne.s32.totalorder %s46, %s47
      %p58 = scmp.eq.s32.totalorder %s26, 0
      %p59 = por %p57, %p58
      %p60 = scmp.ne.s32.totalorder %s46, %s47
      %p61 = scmp.eq.s32.totalorder %s27, 1
      %p62 = por %p60, %p61
      %p64 = scmp.ne.s32.totalorder %s47, %s63
      %p65 = scmp.eq.s32.totalorder %s27, 0
      %p66 = por %p64, %p65
      %s67 = ssub.s32 %s28, %s40
      %s68 = ssub.s32 %s29, %s36
      %s69 = sor.u32 %s67, %s68
      %p70 = scmp.eq.s32.totalorder %s69, 0
      %s72 = sadd.s32 %s71, 1
      %s73 = scalar_select %p70, %s71, %s72
      %p76 = pneg %p70
      %p77 = scmp.eq.s32.totalorder %s21, 1
      %p78 = por %p76, %p77
      %p79 = scmp.ne.s32.totalorder %s71, %s74
      %p80 = scmp.eq.s32.totalorder %s21, 0
      %p81 = por %p79, %p80
      %p82 = scmp.ne.s32.totalorder %s71, %s74
      %p83 = scmp.eq.s32.totalorder %s26, 1
      %p84 = por %p82, %p83
      %p85 = scmp.ne.s32.totalorder %s74, %s75
      %p86 = scmp.eq.s32.totalorder %s26, 0
      %p87 = por %p85, %p86
      %p88 = scmp.ne.s32.totalorder %s74, %s75
      %p89 = scmp.eq.s32.totalorder %s27, 1
      %p90 = por %p88, %p89
      %p92 = scmp.ne.s32.totalorder %s75, %s91
      %p93 = scmp.eq.s32.totalorder %s27, 0
      %p94 = por %p92, %p93
      %s96 = sadd.s32 %s95, 1
      %p99 = scmp.eq.s32.totalorder %s21, 1
      %p100 = scmp.ne.s32.totalorder %s95, %s97
      %p101 = scmp.eq.s32.totalorder %s21, 0
      %p102 = por %p100, %p101
      %p103 = scmp.ne.s32.totalorder %s95, %s97
      %p104 = scmp.eq.s32.totalorder %s26, 1
      %p105 = por %p103, %p104
      %p106 = scmp.ne.s32.totalorder %s97, %s98
      %p107 = scmp.eq.s32.totalorder %s26, 0
      %p108 = por %p106, %p107
      %p109 = scmp.ne.s32.totalorder %s97, %s98
      %p110 = scmp.eq.s32.totalorder %s27, 1
      %p111 = por %p109, %p110
      %p113 = scmp.ne.s32.totalorder %s98, %s112
      %p114 = scmp.eq.s32.totalorder %s27, 0
      %p115 = por %p113, %p114
      %s117 = sadd.s32 %s116, 1
      %p120 = scmp.eq.s32.totalorder %s21, 1
      %p121 = scmp.ne.s32.totalorder %s116, %s118
      %p122 = scmp.eq.s32.totalorder %s21, 0
      %p123 = por %p121, %p122
      %p124 = scmp.ne.s32.totalorder %s116, %s118
      %p125 = scmp.eq.s32.totalorder %s26, 1
      %p126 = por %p124, %p125
      %p127 = scmp.ne.s32.totalorder %s118, %s119
      %p128 = scmp.eq.s32.totalorder %s26, 0
      %p129 = por %p127, %p128
      %p130 = scmp.ne.s32.totalorder %s118, %s119
      %p131 = scmp.eq.s32.totalorder %s27, 1
      %p132 = por %p130, %p131
      %p134 = scmp.ne.s32.totalorder %s119, %s133
      %p135 = scmp.eq.s32.totalorder %s27, 0
      %p136 = por %p134, %p135
      %s138 = sadd.s32 %s137, 1
      %p141 = scmp.eq.s32.totalorder %s21, 1
      %p142 = scmp.ne.s32.totalorder %s137, %s139
      %p143 = scmp.eq.s32.totalorder %s21, 0
      %p144 = por %p142, %p143
      %p145 = scmp.ne.s32.totalorder %s137, %s139
      %p146 = scmp.eq.s32.totalorder %s26, 1
      %p147 = por %p145, %p146
      %p148 = scmp.ne.s32.totalorder %s139, %s140
      %p149 = scmp.eq.s32.totalorder %s26, 0
      %p150 = por %p148, %p149
      %p151 = scmp.ne.s32.totalorder %s139, %s140
      %p152 = scmp.eq.s32.totalorder %s27, 1
      %p153 = por %p151, %p152
      %p155 = scmp.ne.s32.totalorder %s140, %s154
      %p156 = scmp.eq.s32.totalorder %s27, 0
      %p157 = por %p155, %p156
      %s159 = sadd.s32 %s158, 1
      %p162 = scmp.eq.s32.totalorder %s21, 1
      %p163 = scmp.ne.s32.totalorder %s158, %s160
      %p164 = scmp.eq.s32.totalorder %s21, 0
      %p165 = por %p163, %p164
      %p166 = scmp.ne.s32.totalorder %s158, %s160
      %p167 = scmp.eq.s32.totalorder %s26, 1
      %p168 = por %p166, %p167
      %p169 = scmp.ne.s32.totalorder %s160, %s161
      %p170 = scmp.eq.s32.totalorder %s26, 0
      %p171 = por %p169, %p170
      %p172 = scmp.ne.s32.totalorder %s160, %s161
      %p173 = scmp.eq.s32.totalorder %s27, 1
      %p174 = por %p172, %p173
      %p176 = scmp.ne.s32.totalorder %s161, %s175
      %p177 = scmp.eq.s32.totalorder %s27, 0
      %p178 = por %p176, %p177
      %s180 = sadd.s32 %s179, 1
      %p183 = scmp.eq.s32.totalorder %s21, 1
      %p184 = scmp.ne.s32.totalorder %s179, %s181
      %p185 = scmp.eq.s32.totalorder %s21, 0
      %p186 = por %p184, %p185
      %p187 = scmp.ne.s32.totalorder %s179, %s181
      %p188 = scmp.eq.s32.totalorder %s26, 1
      %p189 = por %p187, %p188
      %p190 = scmp.ne.s32.totalorder %s181, %s182
      %p191 = scmp.eq.s32.totalorder %s26, 0
      %p192 = por %p190, %p191
      %p193 = scmp.ne.s32.totalorder %s181, %s182
      %p194 = scmp.eq.s32.totalorder %s27, 1
      %p195 = por %p193, %p194
      %p197 = scmp.ne.s32.totalorder %s182, %s196
      %p198 = scmp.eq.s32.totalorder %s27, 0
      %p199 = por %p197, %p198
      %s201 = sadd.s32 %s200, 1
      %p204 = scmp.eq.s32.totalorder %s21, 1
      %p205 = scmp.ne.s32.totalorder %s200, %s202
      %p206 = scmp.eq.s32.totalorder %s21, 0
      %p207 = por %p205, %p206
      %p208 = scmp.ne.s32.totalorder %s200, %s202
      %p209 = scmp.eq.s32.totalorder %s26, 1
      %p210 = por %p208, %p209
      %p211 = scmp.ne.s32.totalorder %s202, %s203
      %p212 = scmp.eq.s32.totalorder %s26, 0
      %p213 = por %p211, %p212
      %p214 = scmp.ne.s32.totalorder %s202, %s203
      %p215 = scmp.eq.s32.totalorder %s27, 1
      %p216 = por %p214, %p215
      %p218 = scmp.ne.s32.totalorder %s203, %s217
      %p219 = scmp.eq.s32.totalorder %s27, 0
      %p220 = por %p218, %p219
      %s221 = ssub.s32 %s28, %s40
      %p222 = scmp.eq.s32.totalorder %s221, 0
      %s224 = sadd.s32 %s223, 1
      %s225 = scalar_select %p222, %s223, %s224
      %p228 = pneg %p222
      %p229 = scmp.eq.s32.totalorder %s21, 1
      %p230 = por %p228, %p229
      %p231 = scmp.ne.s32.totalorder %s223, %s226
      %p232 = scmp.eq.s32.totalorder %s21, 0
      %p233 = por %p231, %p232
      %p234 = scmp.ne.s32.totalorder %s223, %s226
      %p235 = scmp.eq.s32.totalorder %s26, 1
      %p236 = por %p234, %p235
      %p237 = scmp.ne.s32.totalorder %s226, %s227
      %p238 = scmp.eq.s32.totalorder %s26, 0
      %p239 = por %p237, %p238
      %p240 = scmp.ne.s32.totalorder %s226, %s227
      %p241 = scmp.eq.s32.totalorder %s27, 1
      %p242 = por %p240, %p241
      %p244 = scmp.ne.s32.totalorder %s227, %s243
      %p245 = scmp.eq.s32.totalorder %s27, 0
      %p246 = por %p244, %p245
      %p247 = scmp.le.s32.totalorder 1, %s21
      %p248 = scmp.lt.s32.totalorder %s21, 3
      %p249 = pnand %p247, %p248
      %p250 = pneg %p249
      // Predicated region
      $region9: #{tpu_custom_call.1} parent=5 // pred_check
        _
      $region10: #{tpu_custom_call.1} parent=5 // pred_check_branch
        %252 = sbr.rel (%p249) target = $region12
      $region11: #{tpu_custom_call.1} parent=5 // pred_region
        %s253 = ssub.s32 %s21, 1
        // Predicated region
        $region13: #{tpu_custom_call.1} parent=11 // pred_check
          %p254 = pneg %p59
        $region14: #{tpu_custom_call.1} parent=11 // pred_check_branch
          %256 = sbr.rel (%p254) target = $region16
        $region15: #{tpu_custom_call.1} parent=11 // pred_region
          %258 = vsyncadd [#allocation4], 0
          %s259 = scalar_lea.hbm %s0, %s30
          %s261 = sshll.u32 %s259, 4
          %s262 = int_to_ptr.hbm [resolvable:$true] %s261
          %s263 = sshll.u32 [#allocation3], 4
          %s264 = int_to_ptr.vmem [resolvable:$true] %s263
          %266 = dma.hbm_to_vmem [thread:$0]  %s262, 16, %s264, [#allocation4]
        $region16: #{tpu_custom_call.1} parent=11 // pred_fallthru
          _
        // Predicated region
        $region17: #{tpu_custom_call.1} parent=11 // pred_check
          %p267 = pneg %p108
        $region18: #{tpu_custom_call.1} parent=11 // pred_check_branch
          %269 = sbr.rel (%p267) target = $region20
        $region19: #{tpu_custom_call.1} parent=11 // pred_region
          %271 = vsyncadd [#allocation7], 0
          %s272 = sshll.u32 %s2, 4
          %s273 = int_to_ptr.hbm [resolvable:$true] %s272
          %s274 = sshll.u32 [#allocation8], 4
          %s275 = int_to_ptr.vmem [resolvable:$true] %s274
          %280 = dma.hbm_to_vmem [thread:$0]  %s273, 128, %s275, [#allocation7], 64, 64, 4
        $region20: #{tpu_custom_call.1} parent=11 // pred_fallthru
          _
        // Predicated region
        $region21: #{tpu_custom_call.1} parent=11 // pred_check
          %p281 = pneg %p129
        $region22: #{tpu_custom_call.1} parent=11 // pred_check_branch
          %283 = sbr.rel (%p281) target = $region24
        $region23: #{tpu_custom_call.1} parent=11 // pred_region
          _
        $region24: #{tpu_custom_call.1} parent=11 // pred_fallthru
          _
        // Predicated region
        $region25: #{tpu_custom_call.1} parent=11 // pred_check
          %p284 = pneg %p150
        $region26: #{tpu_custom_call.1} parent=11 // pred_check_branch
          %286 = sbr.rel (%p284) target = $region28
        $region27: #{tpu_custom_call.1} parent=11 // pred_region
          %288 = vsyncadd [#allocation10], 0
          %s289 = sshll.u32 %s4, 4
          %s290 = int_to_ptr.hbm [resolvable:$true] %s289
          %s291 = sshll.u32 [#allocation9], 4
          %s292 = int_to_ptr.vmem [resolvable:$true] %s291
          %297 = dma.hbm_to_vmem [thread:$0]  %s290, 512, %s292, [#allocation10], 64, 64, 4
        $region28: #{tpu_custom_call.1} parent=11 // pred_fallthru
          _
        // Predicated region
        $region29: #{tpu_custom_call.1} parent=11 // pred_check
          %p298 = pneg %p171
        $region30: #{tpu_custom_call.1} parent=11 // pred_check_branch
          %300 = sbr.rel (%p298) target = $region32
        $region31: #{tpu_custom_call.1} parent=11 // pred_region
          %302 = vsyncadd [#allocation10], 0
          %s303 = sshll.u32 %s5, 4
          %s304 = int_to_ptr.hbm [resolvable:$true] %s303
          %s305 = sshll.u32 [#allocation11], 4
          %s306 = int_to_ptr.vmem [resolvable:$true] %s305
          %311 = dma.hbm_to_vmem [thread:$0]  %s304, 192, %s306, [#allocation10], 64, 64, 4
        $region32: #{tpu_custom_call.1} parent=11 // pred_fallthru
          _
        // Predicated region
        $region33: #{tpu_custom_call.1} parent=11 // pred_check
          %p312 = pneg %p192
        $region34: #{tpu_custom_call.1} parent=11 // pred_check_branch
          %314 = sbr.rel (%p312) target = $region36
        $region35: #{tpu_custom_call.1} parent=11 // pred_region
          %316 = vsyncadd [#allocation13], 0
          %s317 = sshll.u32 %s6, 4
          %s318 = int_to_ptr.hbm [resolvable:$true] %s317
          %s319 = sshll.u32 [#allocation12], 4
          %s320 = int_to_ptr.vmem [resolvable:$true] %s319
          %325 = dma.hbm_to_vmem [thread:$0]  %s318, 256, %s320, [#allocation13], 64, 64, 4
        $region36: #{tpu_custom_call.1} parent=11 // pred_fallthru
          _
        // Predicated region
        $region37: #{tpu_custom_call.1} parent=11 // pred_check
          %p326 = pneg %p213
        $region38: #{tpu_custom_call.1} parent=11 // pred_check_branch
          %328 = sbr.rel (%p326) target = $region40
        $region39: #{tpu_custom_call.1} parent=11 // pred_region
          _
        $region40: #{tpu_custom_call.1} parent=11 // pred_fallthru
          _
      $region12: #{tpu_custom_call.1} parent=5 // pred_fallthru
        _
      %p329 = scmp.lt.s32.totalorder %s21, 2
      // Predicated region
      $region41: #{tpu_custom_call.1} parent=5 // pred_check
        %p330 = pneg %p329
      $region42: #{tpu_custom_call.1} parent=5 // pred_check_branch
        %332 = sbr.rel (%p330) target = $region44
      $region43: #{tpu_custom_call.1} parent=5 // pred_region
        // Predicated region
        $region45: #{tpu_custom_call.1} parent=43 // pred_check
          %p333 = pneg %p81
        $region46: #{tpu_custom_call.1} parent=43 // pred_check_branch
          %335 = sbr.rel (%p333) target = $region48
        $region47: #{tpu_custom_call.1} parent=43 // pred_region
          %s336 = sand.u32 %s21, 1
          %s337 = scalar_lea.sflag [#allocation7], %s336
          %s338 = sand.u32 %s71, 1
          %s339 = smul.addr %s338, 4
          %s340 = scalar_lea.vmem [#allocation6], %s339
          %s341 = smul.u32 2, %s28
          %343 = vsyncadd %s337, 0
          %s344 = smul.addr %s341, 2
          %s345 = sadd.s32 %s29, %s344
          %s346 = smul.addr %s345, 2
          %s347 = scalar_lea.hbm %s1, %s346
          %s348 = sshll.u32 %s347, 4
          %s349 = int_to_ptr.hbm [resolvable:$true] %s348
          %s350 = sshll.u32 %s340, 4
          %s351 = int_to_ptr.vmem [resolvable:$true] %s350
          %356 = dma.hbm_to_vmem [thread:$0]  %s349, 64, %s351, %s337, 64, 32, 2
        $region48: #{tpu_custom_call.1} parent=43 // pred_fallthru
          _
      $region44: #{tpu_custom_call.1} parent=5 // pred_fallthru
        _
      %p357 = scmp.le.s32.totalorder 1, %s21
      %p358 = scmp.lt.s32.totalorder %s21, 3
      %p359 = pnand %p357, %p358
      %p360 = pneg %p359
      // Predicated region
      $region49: #{tpu_custom_call.1} parent=5 // pred_check
        _
      $region50: #{tpu_custom_call.1} parent=5 // pred_check_branch
        %362 = sbr.rel (%p359) target = $region52
      $region51: #{tpu_custom_call.1} parent=5 // pred_region
        %s363 = ssub.s32 %s21, 1
        // Predicated region
        $region53: #{tpu_custom_call.1} parent=51 // pred_check
          %p364 = pneg %p59
        $region54: #{tpu_custom_call.1} parent=51 // pred_check_branch
          %366 = sbr.rel (%p364) target = $region56
        $region55: #{tpu_custom_call.1} parent=51 // pred_region
          %368 = dma.done [#allocation4], 16
        $region56: #{tpu_custom_call.1} parent=51 // pred_fallthru
          _
        %s369 = sand.u32 %s26, 1
        %s370 = scalar_lea.sflag [#allocation7], %s369
        %s371 = sand.u32 %s74, 1
        %s372 = smul.addr %s371, 4
        %s373 = scalar_lea.vmem [#allocation6], %s372
        // Predicated region
        $region57: #{tpu_custom_call.1} parent=51 // pred_check
          %p374 = pneg %p87
        $region58: #{tpu_custom_call.1} parent=51 // pred_check_branch
          %376 = sbr.rel (%p374) target = $region60
        $region59: #{tpu_custom_call.1} parent=51 // pred_region
          %378 = dma.done %s370, 64
        $region60: #{tpu_custom_call.1} parent=51 // pred_fallthru
          _
        // Predicated region
        $region61: #{tpu_custom_call.1} parent=51 // pred_check
          %p379 = pneg %p108
        $region62: #{tpu_custom_call.1} parent=51 // pred_check_branch
          %381 = sbr.rel (%p379) target = $region64
        $region63: #{tpu_custom_call.1} parent=51 // pred_region
          %383 = dma.done [#allocation7], 128
        $region64: #{tpu_custom_call.1} parent=51 // pred_fallthru
          _
        // Predicated region
        $region65: #{tpu_custom_call.1} parent=51 // pred_check
          %p384 = pneg %p150
        $region66: #{tpu_custom_call.1} parent=51 // pred_check_branch
          %386 = sbr.rel (%p384) target = $region68
        $region67: #{tpu_custom_call.1} parent=51 // pred_region
          %388 = dma.done [#allocation10], 512
        $region68: #{tpu_custom_call.1} parent=51 // pred_fallthru
          _
        // Predicated region
        $region69: #{tpu_custom_call.1} parent=51 // pred_check
          %p389 = pneg %p171
        $region70: #{tpu_custom_call.1} parent=51 // pred_check_branch
          %391 = sbr.rel (%p389) target = $region72
        $region71: #{tpu_custom_call.1} parent=51 // pred_region
          %393 = dma.done [#allocation10], 192
        $region72: #{tpu_custom_call.1} parent=51 // pred_fallthru
          _
        // Predicated region
        $region73: #{tpu_custom_call.1} parent=51 // pred_check
          %p394 = pneg %p192
        $region74: #{tpu_custom_call.1} parent=51 // pred_check_branch
          %396 = sbr.rel (%p394) target = $region76
        $region75: #{tpu_custom_call.1} parent=51 // pred_region
          %398 = dma.done [#allocation13], 256
        $region76: #{tpu_custom_call.1} parent=51 // pred_fallthru
          _
        %p399 = pneg %p59
        %p400 = pneg %p56
        %s401 = sand.u32 %s26, 1
        %s402 = scalar_lea.sflag [#allocation7], %s401
        %s403 = sand.u32 %s74, 1
        %s404 = smul.addr %s403, 4
        %s405 = scalar_lea.vmem [#allocation6], %s404
        %p406 = pneg %p87
        %p407 = pneg %p84
        %p408 = pneg %p108
        %p409 = pneg %p105
        %p410 = pneg %p129
        %p411 = pneg %p126
        %p412 = pneg %p150
        %p413 = pneg %p147
        %p414 = pneg %p171
        %p415 = pneg %p168
        %p416 = pneg %p192
        %p417 = pneg %p189
        %p418 = pneg %p213
        %p419 = pneg %p210
        %p420 = pneg %p239
        %p421 = pneg %p236
        %s422 = smul.u32 2, %s30
        %p424 = scmp.eq.s32.totalorder %s31, 0
        // Predicated region
        $region77: #{tpu_custom_call.1} parent=51 // pred_check
          %p425 = pneg %p424
        $region78: #{tpu_custom_call.1} parent=51 // pred_check_branch
          %427 = sbr.rel (%p425) target = $region80
        $region79: #{tpu_custom_call.1} parent=51 // pred_region
          %vm428 = vcmask 25600
          %429 = vst.msk [vmem:[#allocation2] sm:$0x3] %vm428, 0.0
        $region80: #{tpu_custom_call.1} parent=51 // pred_fallthru
          _
        %v430 = vld [vmem:[#allocation2] sm:$0x3]
        %v431 = vld [vmem:[%s373] sm:$0x3]
        %v432 = vld [vmem:[%s373 + $0x2] sm:$0x3]
        %v433 = vunpack.c.l.bf16 %v431
        %v434 = vunpack.c.l.bf16 %v432
        %vm435 = vcmask 1043456
        %v436 = vsel %vm435, %v433, 0.0
        %437 = vadd.xlane.f32.xlu0 %v436
        %v438 = vpop.xlane.xlu0 %437
        %v439 = vsel %vm435, %v434, 0.0
        %440 = vadd.xlane.f32.xlu0 %v439
        %v441 = vpop.xlane.xlu0 %440
        %v444 = vlaneseq
        %v445 = vand.u32 %v444, 127
        %v446 = vperm.slane %v438, %v445
        %v447 = vperm.slane %v441, %v445
        %vm448 = vcmask 1041409
        %v449 = vsel %vm448, %v447, %v446
        %v451 = vadd.f32 %v430, %v449
        %vm452 = vcmask 25600
        %453 = vst.msk [vmem:[#allocation2] sm:$0x3] %vm452, %v451
        %p454 = scmp.eq.s32.totalorder %s31, 1
        // Predicated region
        $region81: #{tpu_custom_call.1} parent=51 // pred_check
          %p455 = pneg %p454
        $region82: #{tpu_custom_call.1} parent=51 // pred_check_branch
          %457 = sbr.rel (%p455) target = $region84
        $region83: #{tpu_custom_call.1} parent=51 // pred_region
          %v458 = vld [vmem:[#allocation2] sm:$0x3]
          %v459 = vmul.f32 %v458, 0.00390625
          %v460 = vpack.c.bf16 %v459, %v459
          %v461 = vld [vmem:[#allocation3] sm:$0x1]
          %v462 = vld [vmem:[#allocation8] sm:$0xf]
          %v463 = vld [vmem:[#allocation8 + $0x4] sm:$0xf]
          %v464 = vld [vmem:[%s3] sm:$0x3]
          %vm465 = vcmask 31744
          %v467 = vsel %vm465, %v460, 0
          %vm469 = vcmask 1041408
          %v471 = vsel %vm469, %v464, 0
          %473 = vmatpush.bf16.msra.mxu0 0
          %474 = vmatpush.bf16.msra.mxu0 0
          %475 = vmatpush.bf16.msra.mxu0 0
          %476 = vmatpush.bf16.msra.mxu0 0
          %477 = vmatpush.bf16.msra.mxu0 0
          %478 = vmatpush.bf16.msra.mxu0 0
          %479 = vmatpush.bf16.msra.mxu0 0
          %480 = vmatpush.bf16.msra.mxu0 %v471
          %481 = vmatmul.bf16.gmra.mxu0 %v467
          %v482 = vpop.f32.mrf.mxu0
          %v483 = vadd.f32 0.0, %v482
          %v484 = vpop.f32.mrf.mxu0
          %485 = vdwg.mxu0
          %v488 = vunpack.c.l.b16 %v462
          %v489 = vunpack.c.l.b16 %v463
          %v490 = vpack.c.b16 %v489, %v488
          %vm492 = vcmask 130048
          %v494 = vsel %vm492, %v461, 0
          %496 = vmatpush.bf16.msra.mxu0 0
          %497 = vmatpush.bf16.msra.mxu0 0
          %498 = vmatpush.bf16.msra.mxu0 0
          %499 = vmatpush.bf16.msra.mxu0 0
          %500 = vmatpush.bf16.msra.mxu0 0
          %501 = vmatpush.bf16.msra.mxu0 0
          %502 = vmatpush.bf16.msra.mxu0 0
          %503 = vmatpush.bf16.msra.mxu0 %v490
          %504 = vmatmul.bf16.gmra.mxu0 %v494
          %v505 = vpop.f32.mrf.mxu0
          %v506 = vadd.f32 %v483, %v505
          %v507 = vpop.f32.mrf.mxu0
          %508 = vdwg.mxu0
          %v509 = vld [vmem:[#allocation11] sm:$0x7]
          %v510 = vperm.slane %v509, 0
          %v511 = vadd.f32 %v506, %v510
          %vm512 = vcmask 254976
          %v513 = vsel %vm512, %v511, 0.0
          %514 = vadd.xlane.f32.xlu0 %v513
          %v515 = vpop.xlane.xlu0 %514
          %v516 = vrcp.pop 32.0
          %v517 = vmul.f32 32.0, %v516
          %v518 = vsub.f32 1.0, %v517
          %v519 = vmul.f32 %v516, %v518
          %v520 = vadd.f32 %v516, %v519
          %vm521 = vweird.f32 %v516
          %v522 = vsel %vm521, %v516, %v520
          %v523 = vmul.f32 %v515, %v522
          %v524 = vsub.f32 %v511, %v523
          %v525 = vmul.f32 %v524, %v524
          %v526 = vsel %vm512, %v525, 0.0
          %527 = vadd.xlane.f32.xlu0 %v526
          %v528 = vpop.xlane.xlu0 %527
          %v529 = vmul.f32 %v528, %v522
          %v530 = vadd.f32 %v529, 1e-05
          %v531 = vrsqrt.pop %v530
          %v532 = vmul.f32 %v531, %v530
          %v533 = vmul.f32 %v532, %v531
          %v534 = vmul.f32 0.5, %v533
          %v535 = vsub.f32 1.5, %v534
          %v536 = vmul.f32 %v531, %v535
          %vm537 = vweird.f32 %v530
          %vm538 = vweird.f32 %v531
          %vm539 = vmor %vm537, %vm538
          %v540 = vsel %vm539, %v531, %v536
          %v541 = vperm.slane %v509, 1
          %v542 = vmul.f32 %v541, %v540
          %v543 = vmul.f32 %v524, %v542
          %v544 = vperm.slane %v509, 2
          %v545 = vadd.f32 %v543, %v544
          %v546 = vmax.f32 %v545, 0.0
          %v547 = vpack.c.bf16 %v546, %v546
          %v548 = vld [vmem:[#allocation9] sm:$0xf]
          %v549 = vld [vmem:[#allocation9 + $0x4] sm:$0xf]
          %v550 = vld [vmem:[#allocation9 + $0x8] sm:$0xf]
          %v551 = vld [vmem:[#allocation9 + $0xc] sm:$0xf]
          %s552 = scalar_lea.vmem [#allocation11], 4
          %v553 = vld [vmem:[%s552] sm:$0x7]
          %v554 = vperm.slane %v553, 0
          %v559 = vunpack.c.l.b16 %v548
          %v560 = vunpack.c.l.b16 %v549
          %v561 = vunpack.c.l.b16 %v550
          %v562 = vunpack.c.l.b16 %v551
          %v563 = vpack.c.b16 %v560, %v559
          %v564 = vpack.c.b16 %v562, %v561
          %vm567 = vcmask 261120
          %v569 = vsel %vm567, %v547, 0
          %571 = vmatpush.bf16.msra.mxu0 0
          %572 = vmatpush.bf16.msra.mxu0 0
          %573 = vmatpush.bf16.msra.mxu0 0
          %574 = vmatpush.bf16.msra.mxu0 0
          %575 = vmatpush.bf16.msra.mxu0 0
          %576 = vmatpush.bf16.msra.mxu0 0
          %577 = vmatpush.bf16.msra.mxu0 %v564
          %578 = vmatpush.bf16.msra.mxu0 %v563
          %579 = vmatmul.bf16.gmra.mxu0 %v569
          %v580 = vpop.f32.mrf.mxu0
          %v581 = vadd.f32 %v554, %v580
          %v582 = vpop.f32.mrf.mxu0
          %583 = vdwg.mxu0
          %v584 = vsel %vm512, %v581, 0.0
          %585 = vadd.xlane.f32.xlu0 %v584
          %v586 = vpop.xlane.xlu0 %585
          %v587 = vmul.f32 %v586, %v522
          %v588 = vsub.f32 %v581, %v587
          %v589 = vmul.f32 %v588, %v588
          %v590 = vsel %vm512, %v589, 0.0
          %591 = vadd.xlane.f32.xlu0 %v590
          %v592 = vpop.xlane.xlu0 %591
          %v593 = vmul.f32 %v592, %v522
          %v594 = vadd.f32 %v593, 1e-05
          %v595 = vrsqrt.pop %v594
          %v596 = vmul.f32 %v595, %v594
          %v597 = vmul.f32 %v596, %v595
          %v598 = vmul.f32 0.5, %v597
          %v599 = vsub.f32 1.5, %v598
          %v600 = vmul.f32 %v595, %v599
          %vm601 = vweird.f32 %v594
          %vm602 = vweird.f32 %v595
          %vm603 = vmor %vm601, %vm602
          %v604 = vsel %vm603, %v595, %v600
          %v605 = vperm.slane %v553, 1
          %v606 = vmul.f32 %v605, %v604
          %v607 = vmul.f32 %v588, %v606
          %v608 = vperm.slane %v553, 2
          %v609 = vadd.f32 %v607, %v608
          %v610 = vmax.f32 %v609, 0.0
          %v611 = vpack.c.bf16 %v610, %v610
          %s612 = scalar_lea.vmem [#allocation9], 16
          %v613 = vld [vmem:[%s612] sm:$0xf]
          %v614 = vld [vmem:[%s612 + $0x4] sm:$0xf]
          %v615 = vld [vmem:[%s612 + $0x8] sm:$0xf]
          %v616 = vld [vmem:[%s612 + $0xc] sm:$0xf]
          %s617 = scalar_lea.vmem [#allocation11], 8
          %v618 = vld [vmem:[%s617] sm:$0x7]
          %v619 = vperm.slane %v618, 0
          %v624 = vunpack.c.l.b16 %v613
          %v625 = vunpack.c.l.b16 %v614
          %v626 = vunpack.c.l.b16 %v615
          %v627 = vunpack.c.l.b16 %v616
          %v628 = vpack.c.b16 %v625, %v624
          %v629 = vpack.c.b16 %v627, %v626
          %v633 = vsel %vm567, %v611, 0
          %635 = vmatpush.bf16.msra.mxu0 0
          %636 = vmatpush.bf16.msra.mxu0 0
          %637 = vmatpush.bf16.msra.mxu0 0
          %638 = vmatpush.bf16.msra.mxu0 0
          %639 = vmatpush.bf16.msra.mxu0 0
          %640 = vmatpush.bf16.msra.mxu0 0
          %641 = vmatpush.bf16.msra.mxu0 %v629
          %642 = vmatpush.bf16.msra.mxu0 %v628
          %643 = vmatmul.bf16.gmra.mxu0 %v633
          %v644 = vpop.f32.mrf.mxu0
          %v645 = vadd.f32 %v619, %v644
          %v646 = vpop.f32.mrf.mxu0
          %647 = vdwg.mxu0
          %v648 = vsel %vm512, %v645, 0.0
          %649 = vadd.xlane.f32.xlu0 %v648
          %v650 = vpop.xlane.xlu0 %649
          %v651 = vmul.f32 %v650, %v522
          %v652 = vsub.f32 %v645, %v651
          %v653 = vmul.f32 %v652, %v652
          %v654 = vsel %vm512, %v653, 0.0
          %655 = vadd.xlane.f32.xlu0 %v654
          %v656 = vpop.xlane.xlu0 %655
          %v657 = vmul.f32 %v656, %v522
          %v658 = vadd.f32 %v657, 1e-05
          %v659 = vrsqrt.pop %v658
          %v660 = vmul.f32 %v659, %v658
          %v661 = vmul.f32 %v660, %v659
          %v662 = vmul.f32 0.5, %v661
          %v663 = vsub.f32 1.5, %v662
          %v664 = vmul.f32 %v659, %v663
          %vm665 = vweird.f32 %v658
          %vm666 = vweird.f32 %v659
          %vm667 = vmor %vm665, %vm666
          %v668 = vsel %vm667, %v659, %v664
          %v669 = vperm.slane %v618, 1
          %v670 = vmul.f32 %v669, %v668
          %v671 = vmul.f32 %v652, %v670
          %v672 = vperm.slane %v618, 2
          %v673 = vadd.f32 %v671, %v672
          %v674 = vmax.f32 %v673, 0.0
          %v675 = vpack.c.bf16 %v674, %v674
          %v676 = vld [vmem:[#allocation12] sm:$0xf]
          %v677 = vld [vmem:[#allocation12 + $0x4] sm:$0xf]
          %v678 = vld [vmem:[#allocation12 + $0x8] sm:$0xf]
          %v679 = vld [vmem:[#allocation12 + $0xc] sm:$0xf]
          %v680 = vld [vmem:[%s7] sm:$0x1]
          %v682 = vperm.slane %v680, 0
          %v688 = vunpack.c.l.b16 %v676
          %v689 = vunpack.c.l.b16 %v677
          %v690 = vunpack.c.l.b16 %v678
          %v691 = vunpack.c.l.b16 %v679
          %v692 = vpack.c.b16 %v689, %v688
          %v693 = vpack.c.b16 %v691, %v690
          %v697 = vsel %vm567, %v675, 0
          %699 = vmatpush.bf16.msra.mxu0 0
          %700 = vmatpush.bf16.msra.mxu0 0
          %701 = vmatpush.bf16.msra.mxu0 0
          %702 = vmatpush.bf16.msra.mxu0 0
          %703 = vmatpush.bf16.msra.mxu0 0
          %704 = vmatpush.bf16.msra.mxu0 0
          %705 = vmatpush.bf16.msra.mxu0 %v693
          %706 = vmatpush.bf16.msra.mxu0 %v692
          %707 = vmatmul.bf16.gmra.mxu0 %v697
          %v708 = vpop.f32.mrf.mxu0
          %v709 = vadd.f32 %v682, %v708
          %v710 = vpop.f32.mrf.mxu0
          %711 = vdwg.mxu0
          %712 = vst [vmem:[#allocation14] sm:$0x3] %v709
        $region84: #{tpu_custom_call.1} parent=51 // pred_fallthru
          _
        // Predicated region
        $region85: #{tpu_custom_call.1} parent=51 // pred_check
          %p713 = pneg %p236
        $region86: #{tpu_custom_call.1} parent=51 // pred_check_branch
          %715 = sbr.rel (%p713) target = $region88
        $region87: #{tpu_custom_call.1} parent=51 // pred_region
          %717 = vsyncadd [#allocation5], 0
          %s718 = smul.addr %s30, 2
          %s719 = scalar_lea.hbm %s8, %s718
          %s721 = sshll.u32 [#allocation14], 4
          %s722 = int_to_ptr.vmem [resolvable:$true] %s721
          %s723 = sshll.u32 %s719, 4
          %s724 = int_to_ptr.hbm [resolvable:$true] %s723
          %726 = dma.vmem_to_hbm [thread:$0]  %s722, 32, %s724, [#allocation5]
        $region88: #{tpu_custom_call.1} parent=51 // pred_fallthru
          _
        // Predicated region
        $region89: #{tpu_custom_call.1} parent=51 // pred_check
          %p727 = pneg %p236
        $region90: #{tpu_custom_call.1} parent=51 // pred_check_branch
          %729 = sbr.rel (%p727) target = $region92
        $region91: #{tpu_custom_call.1} parent=51 // pred_region
          %731 = dma.done [#allocation5], 32
        $region92: #{tpu_custom_call.1} parent=51 // pred_fallthru
          _
      $region52: #{tpu_custom_call.1} parent=5 // pred_fallthru
        _
      %p732 = scmp.le.s32.totalorder 2, %s21
      // Predicated region
      $region93: #{tpu_custom_call.1} parent=5 // pred_check
        %p733 = pneg %p732
      $region94: #{tpu_custom_call.1} parent=5 // pred_check_branch
        %735 = sbr.rel (%p733) target = $region96
      $region95: #{tpu_custom_call.1} parent=5 // pred_region
        %s736 = ssub.s32 %s21, 2
      $region96: #{tpu_custom_call.1} parent=5 // pred_fallthru
        _
    $region6: #{tpu_custom_call.1} parent=1 // loop_footer
      %s25 = sadd.s32 1, %s21
    $region7: #{tpu_custom_call.1} parent=1 // loop_footer_branch
      %20 = sbr.rel target = $region3
    $region8: #{tpu_custom_call.1} parent=1 // loop_exit
      _
    %737 = vsyncpa [#allocation4], 1
    %s738 = scalar_lea.sflag [#allocation4], 1
    %739 = vsyncpa %s738, 1
    %740 = vsyncpa [#allocation7], 1
    %s741 = scalar_lea.sflag [#allocation7], 1
    %742 = vsyncpa %s741, 1
    %743 = vsyncpa [#allocation10], 1
    %744 = vsyncpa [#allocation13], 1
    %745 = vsyncpa [#allocation5], 1
    %s746 = scalar_lea.sflag [#allocation5], 1
    %747 = vsyncpa %s746, 1

// kernel: tpu_custom_call.1
$region0: #{tpu_custom_call.1}
  #allocation0 [shape = 'u32[]', space=smem, size = 0x4, offset = 0x4, fixed_abs, tag = 'smem constant byte address 0x4 - core index']
  #allocation1 [shape = 'u32[72,128]{1,0:T(1,128)}', space=vmem, size = 0x9000, scoped, tag = 'internal scratch']
  #allocation2 [shape = 'f32[2,4]{1,0:T(2,128)}', space=vmem, size = 0x400, scoped, tag = 'scratch operand']
  %s0 = inlined_call_operand.hbm [shape: bf16[2,16], index: 0, kind: input, shape index: {}]
  %s1 = inlined_call_operand.hbm [shape: bf16[2,4,256], index: 1, kind: input, shape index: {}]
  %s2 = inlined_call_operand.hbm [shape: bf16[16,32], index: 2, kind: input, shape index: {}]
  %s3 = inlined_call_operand.vmem [shape: bf16[4,32], index: 3, kind: input, shape index: {}]
  %s4 = inlined_call_operand.hbm [shape: bf16[2,32,32], index: 4, kind: input, shape index: {}]
  %s5 = inlined_call_operand.hbm [shape: f32[3,3,32], index: 5, kind: input, shape index: {}]
  %s6 = inlined_call_operand.hbm [shape: bf16[32,128], index: 6, kind: input, shape index: {}]
  %s7 = inlined_call_operand.vmem [shape: f32[1,128], index: 7, kind: input, shape index: {}]
  %s8 = inlined_call_operand.hbm [shape: f32[2,128], index: 8, kind: output, shape index: {}]
  %s9 = sld [smem:[#allocation0]]
  $region97: #{tpu_custom_call.1} parent=0
    _
  %s11 = ssub.s32 1, %s9
  %s12 = scalar_select 0, %s11, %s9
  $region1: #{tpu_custom_call.1} parent=0
    #allocation3 [shape = 'u8[512]{0}', space=vmem, size = 0x400, scoped, tag = 'input window, operand 0, single buffered']
    #allocation4 [shape = 's32[2]{0}', space=sflag, size = 0x8, scoped, tag = 'scoped memory for tpu_custom_call.1']
    #allocation5 [shape = 's32[2]{0}', space=sflag, size = 0x8, scoped, tag = 'scoped memory for tpu_custom_call.1']
    #allocation6 [shape = 'u8[4096]{0}', space=vmem, size = 0x1000, scoped, tag = 'input window, operand 1']
    #allocation7 [shape = 's32[2]{0}', space=sflag, size = 0x8, scoped, tag = 'scoped memory for tpu_custom_call.1']
    #allocation8 [shape = 'u8[4096]{0}', space=vmem, size = 0x1000, scoped, tag = 'input window, operand 2, single buffered']
    #allocation9 [shape = 'u8[16384]{0}', space=vmem, size = 0x4000, scoped, tag = 'input window, operand 4, single buffered']
    #allocation10 [shape = 's32[1]{0}', space=sflag, size = 0x4, scoped, tag = 'scoped memory for tpu_custom_call.1']
    #allocation11 [shape = 'u8[6144]{0}', space=vmem, size = 0x1800, scoped, tag = 'input window, operand 5, single buffered']
    #allocation12 [shape = 'u8[8192]{0}', space=vmem, size = 0x2000, scoped, tag = 'input window, operand 6, single buffered']
    #allocation13 [shape = 's32[1]{0}', space=sflag, size = 0x4, scoped, tag = 'scoped memory for tpu_custom_call.1']
    #allocation14 [shape = 'u8[1024]{0}', space=vmem, size = 0x400, scoped, tag = 'output window, operand 0, single buffered']
    %13 = vsyncpa [#allocation4], 0
    %14 = vsyncpa [#allocation7], 0
    %s15 = scalar_lea.sflag [#allocation7], 1
    %16 = vsyncpa %s15, 0
    %17 = vsyncpa [#allocation10], 0
    %18 = vsyncpa [#allocation13], 0
    %19 = vsyncpa [#allocation5], 0
    loop: start=0, step=1, limit=4
    $region2: #{tpu_custom_call.1} parent=1 // loop_pre_header
      _
    $region3: #{tpu_custom_call.1} parent=1 // loop_header
      %s21 = sphi 0, %s25
      %p22 = scmp.ge.s32.totalorder %s21, 4
      %s28 = sphi 0, %s40
      %s29 = sphi 0, %s36
      %s30 = sphi 0, %s28
      %s31 = sphi 0, %s29
      %s32 = sphi 0, %s30
      %s33 = sphi 0, %s31
      %s43 = sphi 0, %s45
      %s46 = sphi 0, %s43
      %s47 = sphi 0, %s46
      %s63 = sphi 0, %s47
      %s71 = sphi 0, %s73
      %s74 = sphi 0, %s71
      %s75 = sphi 0, %s74
      %s91 = sphi 0, %s75
      %s95 = sphi 0, %s95
      %s97 = sphi 0, %s95
      %s98 = sphi 0, %s97
      %s112 = sphi 0, %s98
      %s116 = sphi 0, %s116
      %s118 = sphi 0, %s116
      %s119 = sphi 0, %s118
      %s133 = sphi 0, %s119
      %s137 = sphi 0, %s137
      %s139 = sphi 0, %s137
      %s140 = sphi 0, %s139
      %s154 = sphi 0, %s140
      %s158 = sphi 0, %s158
      %s160 = sphi 0, %s158
      %s161 = sphi 0, %s160
      %s175 = sphi 0, %s161
      %s179 = sphi 0, %s179
      %s181 = sphi 0, %s179
      %s182 = sphi 0, %s181
      %s196 = sphi 0, %s182
      %s200 = sphi 0, %s200
      %s202 = sphi 0, %s200
      %s203 = sphi 0, %s202
      %s217 = sphi 0, %s203
      %s223 = sphi 0, %s225
      %s226 = sphi 0, %s223
      %s227 = sphi 0, %s226
      %s243 = sphi 0, %s227
    $region4: #{tpu_custom_call.1} parent=1 // loop_header_branch
      %24 = sbr.rel (%p22) target = $region8
    $region5: #{tpu_custom_call.1} parent=1 // loop_body
      %s26 = ssub.s32 %s21, 1
      %s27 = ssub.s32 %s21, 2
      %s34 = sadd.s32 1, %s29
      %p35 = scmp.ge.s32.totalorder %s34, 2
      %s36 = scalar_select %p35, 0, %s34
      %s37 = sadd.s32 1, %s28
      %s38 = scalar_select %p35, %s37, %s28
      %p39 = scmp.ge.s32.totalorder %s38, 1
      %s40 = scalar_select %p39, 0, %s38
      %s41 = ssub.s32 %s28, %s40
      %p42 = scmp.eq.s32.totalorder %s41, 0
      %s44 = sadd.s32 %s43, 1
      %s45 = scalar_select %p42, %s43, %s44
      %p48 = pneg %p42
      %p49 = scmp.eq.s32.totalorder %s21, 1
      %p50 = por %p48, %p49
      %p51 = scmp.ne.s32.totalorder %s43, %s46
      %p52 = scmp.eq.s32.totalorder %s21, 0
      %p53 = por %p51, %p52
      %p54 = scmp.ne.s32.totalorder %s43, %s46
      %p55 = scmp.eq.s32.totalorder %s26, 1
      %p56 = por %p54, %p55
      %p57 = scmp.ne.s32.totalorder %s46, %s47
      %p58 = scmp.eq.s32.totalorder %s26, 0
      %p59 = por %p57, %p58
      %p60 = scmp.ne.s32.totalorder %s46, %s47
      %p61 = scmp.eq.s32.totalorder %s27, 1
      %p62 = por %p60, %p61
      %p64 = scmp.ne.s32.totalorder %s47, %s63
      %p65 = scmp.eq.s32.totalorder %s27, 0
      %p66 = por %p64, %p65
      %s67 = ssub.s32 %s28, %s40
      %s68 = ssub.s32 %s29, %s36
      %s69 = sor.u32 %s67, %s68
      %p70 = scmp.eq.s32.totalorder %s69, 0
      %s72 = sadd.s32 %s71, 1
      %s73 = scalar_select %p70, %s71, %s72
      %p76 = pneg %p70
      %p77 = scmp.eq.s32.totalorder %s21, 1
      %p78 = por %p76, %p77
      %p79 = scmp.ne.s32.totalorder %s71, %s74
      %p80 = scmp.eq.s32.totalorder %s21, 0
      %p81 = por %p79, %p80
      %p82 = scmp.ne.s32.totalorder %s71, %s74
      %p83 = scmp.eq.s32.totalorder %s26, 1
      %p84 = por %p82, %p83
      %p85 = scmp.ne.s32.totalorder %s74, %s75
      %p86 = scmp.eq.s32.totalorder %s26, 0
      %p87 = por %p85, %p86
      %p88 = scmp.ne.s32.totalorder %s74, %s75
      %p89 = scmp.eq.s32.totalorder %s27, 1
      %p90 = por %p88, %p89
      %p92 = scmp.ne.s32.totalorder %s75, %s91
      %p93 = scmp.eq.s32.totalorder %s27, 0
      %p94 = por %p92, %p93
      %s96 = sadd.s32 %s95, 1
      %p99 = scmp.eq.s32.totalorder %s21, 1
      %p100 = scmp.ne.s32.totalorder %s95, %s97
      %p101 = scmp.eq.s32.totalorder %s21, 0
      %p102 = por %p100, %p101
      %p103 = scmp.ne.s32.totalorder %s95, %s97
      %p104 = scmp.eq.s32.totalorder %s26, 1
      %p105 = por %p103, %p104
      %p106 = scmp.ne.s32.totalorder %s97, %s98
      %p107 = scmp.eq.s32.totalorder %s26, 0
      %p108 = por %p106, %p107
      %p109 = scmp.ne.s32.totalorder %s97, %s98
      %p110 = scmp.eq.s32.totalorder %s27, 1
      %p111 = por %p109, %p110
      %p113 = scmp.ne.s32.totalorder %s98, %s112
      %p114 = scmp.eq.s32.totalorder %s27, 0
      %p115 = por %p113, %p114
      %s117 = sadd.s32 %s116, 1
      %p120 = scmp.eq.s32.totalorder %s21, 1
      %p121 = scmp.ne.s32.totalorder %s116, %s118
      %p122 = scmp.eq.s32.totalorder %s21, 0
      %p123 = por %p121, %p122
      %p124 = scmp.ne.s32.totalorder %s116, %s118
      %p125 = scmp.eq.s32.totalorder %s26, 1
      %p126 = por %p124, %p125
      %p127 = scmp.ne.s32.totalorder %s118, %s119
      %p128 = scmp.eq.s32.totalorder %s26, 0
      %p129 = por %p127, %p128
      %p130 = scmp.ne.s32.totalorder %s118, %s119
      %p131 = scmp.eq.s32.totalorder %s27, 1
      %p132 = por %p130, %p131
      %p134 = scmp.ne.s32.totalorder %s119, %s133
      %p135 = scmp.eq.s32.totalorder %s27, 0
      %p136 = por %p134, %p135
      %s138 = sadd.s32 %s137, 1
      %p141 = scmp.eq.s32.totalorder %s21, 1
      %p142 = scmp.ne.s32.totalorder %s137, %s139
      %p143 = scmp.eq.s32.totalorder %s21, 0
      %p144 = por %p142, %p143
      %p145 = scmp.ne.s32.totalorder %s137, %s139
      %p146 = scmp.eq.s32.totalorder %s26, 1
      %p147 = por %p145, %p146
      %p148 = scmp.ne.s32.totalorder %s139, %s140
      %p149 = scmp.eq.s32.totalorder %s26, 0
      %p150 = por %p148, %p149
      %p151 = scmp.ne.s32.totalorder %s139, %s140
      %p152 = scmp.eq.s32.totalorder %s27, 1
      %p153 = por %p151, %p152
      %p155 = scmp.ne.s32.totalorder %s140, %s154
      %p156 = scmp.eq.s32.totalorder %s27, 0
      %p157 = por %p155, %p156
      %s159 = sadd.s32 %s158, 1
      %p162 = scmp.eq.s32.totalorder %s21, 1
      %p163 = scmp.ne.s32.totalorder %s158, %s160
      %p164 = scmp.eq.s32.totalorder %s21, 0
      %p165 = por %p163, %p164
      %p166 = scmp.ne.s32.totalorder %s158, %s160
      %p167 = scmp.eq.s32.totalorder %s26, 1
      %p168 = por %p166, %p167
      %p169 = scmp.ne.s32.totalorder %s160, %s161
      %p170 = scmp.eq.s32.totalorder %s26, 0
      %p171 = por %p169, %p170
      %p172 = scmp.ne.s32.totalorder %s160, %s161
      %p173 = scmp.eq.s32.totalorder %s27, 1
      %p174 = por %p172, %p173
      %p176 = scmp.ne.s32.totalorder %s161, %s175
      %p177 = scmp.eq.s32.totalorder %s27, 0
      %p178 = por %p176, %p177
      %s180 = sadd.s32 %s179, 1
      %p183 = scmp.eq.s32.totalorder %s21, 1
      %p184 = scmp.ne.s32.totalorder %s179, %s181
      %p185 = scmp.eq.s32.totalorder %s21, 0
      %p186 = por %p184, %p185
      %p187 = scmp.ne.s32.totalorder %s179, %s181
      %p188 = scmp.eq.s32.totalorder %s26, 1
      %p189 = por %p187, %p188
      %p190 = scmp.ne.s32.totalorder %s181, %s182
      %p191 = scmp.eq.s32.totalorder %s26, 0
      %p192 = por %p190, %p191
      %p193 = scmp.ne.s32.totalorder %s181, %s182
      %p194 = scmp.eq.s32.totalorder %s27, 1
      %p195 = por %p193, %p194
      %p197 = scmp.ne.s32.totalorder %s182, %s196
      %p198 = scmp.eq.s32.totalorder %s27, 0
      %p199 = por %p197, %p198
      %s201 = sadd.s32 %s200, 1
      %p204 = scmp.eq.s32.totalorder %s21, 1
      %p205 = scmp.ne.s32.totalorder %s200, %s202
      %p206 = scmp.eq.s32.totalorder %s21, 0
      %p207 = por %p205, %p206
      %p208 = scmp.ne.s32.totalorder %s200, %s202
      %p209 = scmp.eq.s32.totalorder %s26, 1
      %p210 = por %p208, %p209
      %p211 = scmp.ne.s32.totalorder %s202, %s203
      %p212 = scmp.eq.s32.totalorder %s26, 0
      %p213 = por %p211, %p212
      %p214 = scmp.ne.s32.totalorder %s202, %s203
      %p215 = scmp.eq.s32.totalorder %s27, 1
      %p216 = por %p214, %p215
      %p218 = scmp.ne.s32.totalorder %s203, %s217
      %p219 = scmp.eq.s32.totalorder %s27, 0
      %p220 = por %p218, %p219
      %s221 = ssub.s32 %s28, %s40
      %p222 = scmp.eq.s32.totalorder %s221, 0
      %s224 = sadd.s32 %s223, 1
      %s225 = scalar_select %p222, %s223, %s224
      %p228 = pneg %p222
      %p229 = scmp.eq.s32.totalorder %s21, 1
      %p230 = por %p228, %p229
      %p231 = scmp.ne.s32.totalorder %s223, %s226
      %p232 = scmp.eq.s32.totalorder %s21, 0
      %p233 = por %p231, %p232
      %p234 = scmp.ne.s32.totalorder %s223, %s226
      %p235 = scmp.eq.s32.totalorder %s26, 1
      %p236 = por %p234, %p235
      %p237 = scmp.ne.s32.totalorder %s226, %s227
      %p238 = scmp.eq.s32.totalorder %s26, 0
      %p239 = por %p237, %p238
      %p240 = scmp.ne.s32.totalorder %s226, %s227
      %p241 = scmp.eq.s32.totalorder %s27, 1
      %p242 = por %p240, %p241
      %p244 = scmp.ne.s32.totalorder %s227, %s243
      %p245 = scmp.eq.s32.totalorder %s27, 0
      %p246 = por %p244, %p245
      %p247 = scmp.le.s32.totalorder 1, %s21
      %p248 = scmp.lt.s32.totalorder %s21, 3
      %p249 = pnand %p247, %p248
      %p250 = pneg %p249
      // Predicated region
      $region9: #{tpu_custom_call.1} parent=5 // pred_check
        _
      $region10: #{tpu_custom_call.1} parent=5 // pred_check_branch
        %252 = sbr.rel (%p249) target = $region12
      $region11: #{tpu_custom_call.1} parent=5 // pred_region
        %s253 = ssub.s32 %s21, 1
        // Predicated region
        $region13: #{tpu_custom_call.1} parent=11 // pred_check
          %p254 = pneg %p59
        $region14: #{tpu_custom_call.1} parent=11 // pred_check_branch
          %256 = sbr.rel (%p254) target = $region16
        $region15: #{tpu_custom_call.1} parent=11 // pred_region
          %258 = vsyncadd [#allocation4], 0
          %s259 = scalar_lea.hbm %s0, %s30
          %s261 = sshll.u32 %s259, 4
          %s262 = int_to_ptr.hbm [resolvable:$true] %s261
          %s263 = sshll.u32 [#allocation3], 4
          %s264 = int_to_ptr.vmem [resolvable:$true] %s263
          %266 = dma.hbm_to_vmem [thread:$0]  %s262, 16, %s264, [#allocation4]
        $region16: #{tpu_custom_call.1} parent=11 // pred_fallthru
          _
        // Predicated region
        $region17: #{tpu_custom_call.1} parent=11 // pred_check
          %p267 = pneg %p108
        $region18: #{tpu_custom_call.1} parent=11 // pred_check_branch
          %269 = sbr.rel (%p267) target = $region20
        $region19: #{tpu_custom_call.1} parent=11 // pred_region
          %271 = vsyncadd [#allocation7], 0
          %s272 = sshll.u32 %s2, 4
          %s273 = int_to_ptr.hbm [resolvable:$true] %s272
          %s274 = sshll.u32 [#allocation8], 4
          %s275 = int_to_ptr.vmem [resolvable:$true] %s274
          %280 = dma.hbm_to_vmem [thread:$0]  %s273, 128, %s275, [#allocation7], 64, 64, 4
        $region20: #{tpu_custom_call.1} parent=11 // pred_fallthru
          _
        // Predicated region
        $region21: #{tpu_custom_call.1} parent=11 // pred_check
          %p281 = pneg %p129
        $region22: #{tpu_custom_call.1} parent=11 // pred_check_branch
          %283 = sbr.rel (%p281) target = $region24
        $region23: #{tpu_custom_call.1} parent=11 // pred_region
          _
        $region24: #{tpu_custom_call.1} parent=11 // pred_fallthru
          _
        // Predicated region
        $region25: #{tpu_custom_call.1} parent=11 // pred_check
          %p284 = pneg %p150
        $region26: #{tpu_custom_call.1} parent=11 // pred_check_branch
          %286 = sbr.rel (%p284) target = $region28
        $region27: #{tpu_custom_call.1} parent=11 // pred_region
          %288 = vsyncadd [#allocation10], 0
          %s289 = sshll.u32 %s4, 4
          %s290 = int_to_ptr.hbm [resolvable:$true] %s289
          %s291 = sshll.u32 [#allocation9], 4
          %s292 = int_to_ptr.vmem [resolvable:$true] %s291
          %297 = dma.hbm_to_vmem [thread:$0]  %s290, 512, %s292, [#allocation10], 64, 64, 4
        $region28: #{tpu_custom_call.1} parent=11 // pred_fallthru
          _
        // Predicated region
        $region29: #{tpu_custom_call.1} parent=11 // pred_check
          %p298 = pneg %p171
        $region30: #{tpu_custom_call.1} parent=11 // pred_check_branch
          %300 = sbr.rel (%p298) target = $region32
        $region31: #{tpu_custom_call.1} parent=11 // pred_region
          %302 = vsyncadd [#allocation10], 0
          %s303 = sshll.u32 %s5, 4
          %s304 = int_to_ptr.hbm [resolvable:$true] %s303
          %s305 = sshll.u32 [#allocation11], 4
          %s306 = int_to_ptr.vmem [resolvable:$true] %s305
          %311 = dma.hbm_to_vmem [thread:$0]  %s304, 192, %s306, [#allocation10], 64, 64, 4
        $region32: #{tpu_custom_call.1} parent=11 // pred_fallthru
          _
        // Predicated region
        $region33: #{tpu_custom_call.1} parent=11 // pred_check
          %p312 = pneg %p192
        $region34: #{tpu_custom_call.1} parent=11 // pred_check_branch
          %314 = sbr.rel (%p312) target = $region36
        $region35: #{tpu_custom_call.1} parent=11 // pred_region
          %316 = vsyncadd [#allocation13], 0
          %s317 = sshll.u32 %s6, 4
          %s318 = int_to_ptr.hbm [resolvable:$true] %s317
          %s319 = sshll.u32 [#allocation12], 4
          %s320 = int_to_ptr.vmem [resolvable:$true] %s319
          %325 = dma.hbm_to_vmem [thread:$0]  %s318, 256, %s320, [#allocation13], 64, 64, 4
        $region36: #{tpu_custom_call.1} parent=11 // pred_fallthru
          _
        // Predicated region
        $region37: #{tpu_custom_call.1} parent=11 // pred_check
          %p326 = pneg %p213
        $region38: #{tpu_custom_call.1} parent=11 // pred_check_branch
          %328 = sbr.rel (%p326) target = $region40
        $region39: #{tpu_custom_call.1} parent=11 // pred_region
          _
        $region40: #{tpu_custom_call.1} parent=11 // pred_fallthru
          _
      $region12: #{tpu_custom_call.1} parent=5 // pred_fallthru
        _
      %p329 = scmp.lt.s32.totalorder %s21, 2
      // Predicated region
      $region41: #{tpu_custom_call.1} parent=5 // pred_check
        %p330 = pneg %p329
      $region42: #{tpu_custom_call.1} parent=5 // pred_check_branch
        %332 = sbr.rel (%p330) target = $region44
      $region43: #{tpu_custom_call.1} parent=5 // pred_region
        // Predicated region
        $region45: #{tpu_custom_call.1} parent=43 // pred_check
          %p333 = pneg %p81
        $region46: #{tpu_custom_call.1} parent=43 // pred_check_branch
          %335 = sbr.rel (%p333) target = $region48
        $region47: #{tpu_custom_call.1} parent=43 // pred_region
          %s336 = sand.u32 %s21, 1
          %s337 = scalar_lea.sflag [#allocation7], %s336
          %s338 = sand.u32 %s71, 1
          %s339 = smul.addr %s338, 4
          %s340 = scalar_lea.vmem [#allocation6], %s339
          %s341 = smul.u32 2, %s28
          %343 = vsyncadd %s337, 0
          %s344 = smul.addr %s341, 2
          %s345 = sadd.s32 %s29, %s344
          %s346 = smul.addr %s345, 2
          %s347 = scalar_lea.hbm %s1, %s346
          %s348 = sshll.u32 %s347, 4
          %s349 = int_to_ptr.hbm [resolvable:$true] %s348
          %s350 = sshll.u32 %s340, 4
          %s351 = int_to_ptr.vmem [resolvable:$true] %s350
          %356 = dma.hbm_to_vmem [thread:$0]  %s349, 64, %s351, %s337, 64, 32, 2
        $region48: #{tpu_custom_call.1} parent=43 // pred_fallthru
          _
      $region44: #{tpu_custom_call.1} parent=5 // pred_fallthru
        _
      %p357 = scmp.le.s32.totalorder 1, %s21
      %p358 = scmp.lt.s32.totalorder %s21, 3
      %p359 = pnand %p357, %p358
      %p360 = pneg %p359
      // Predicated region
      $region49: #{tpu_custom_call.1} parent=5 // pred_check
        _
      $region50: #{tpu_custom_call.1} parent=5 // pred_check_branch
        %362 = sbr.rel (%p359) target = $region52
      $region51: #{tpu_custom_call.1} parent=5 // pred_region
        %s363 = ssub.s32 %s21, 1
        // Predicated region
        $region53: #{tpu_custom_call.1} parent=51 // pred_check
          %p364 = pneg %p59
        $region54: #{tpu_custom_call.1} parent=51 // pred_check_branch
          %366 = sbr.rel (%p364) target = $region56
        $region55: #{tpu_custom_call.1} parent=51 // pred_region
          %368 = dma.done [#allocation4], 16
        $region56: #{tpu_custom_call.1} parent=51 // pred_fallthru
          _
        %s369 = sand.u32 %s26, 1
        %s370 = scalar_lea.sflag [#allocation7], %s369
        %s371 = sand.u32 %s74, 1
        %s372 = smul.addr %s371, 4
        %s373 = scalar_lea.vmem [#allocation6], %s372
        // Predicated region
        $region57: #{tpu_custom_call.1} parent=51 // pred_check
          %p374 = pneg %p87
        $region58: #{tpu_custom_call.1} parent=51 // pred_check_branch
          %376 = sbr.rel (%p374) target = $region60
        $region59: #{tpu_custom_call.1} parent=51 // pred_region
          %378 = dma.done %s370, 64
        $region60: #{tpu_custom_call.1} parent=51 // pred_fallthru
          _
        // Predicated region
        $region61: #{tpu_custom_call.1} parent=51 // pred_check
          %p379 = pneg %p108
        $region62: #{tpu_custom_call.1} parent=51 // pred_check_branch
          %381 = sbr.rel (%p379) target = $region64
        $region63: #{tpu_custom_call.1} parent=51 // pred_region
          %383 = dma.done [#allocation7], 128
        $region64: #{tpu_custom_call.1} parent=51 // pred_fallthru
          _
        // Predicated region
        $region65: #{tpu_custom_call.1} parent=51 // pred_check
          %p384 = pneg %p150
        $region66: #{tpu_custom_call.1} parent=51 // pred_check_branch
          %386 = sbr.rel (%p384) target = $region68
        $region67: #{tpu_custom_call.1} parent=51 // pred_region
          %388 = dma.done [#allocation10], 512
        $region68: #{tpu_custom_call.1} parent=51 // pred_fallthru
          _
        // Predicated region
        $region69: #{tpu_custom_call.1} parent=51 // pred_check
          %p389 = pneg %p171
        $region70: #{tpu_custom_call.1} parent=51 // pred_check_branch
          %391 = sbr.rel (%p389) target = $region72
        $region71: #{tpu_custom_call.1} parent=51 // pred_region
          %393 = dma.done [#allocation10], 192
        $region72: #{tpu_custom_call.1} parent=51 // pred_fallthru
          _
        // Predicated region
        $region73: #{tpu_custom_call.1} parent=51 // pred_check
          %p394 = pneg %p192
        $region74: #{tpu_custom_call.1} parent=51 // pred_check_branch
          %396 = sbr.rel (%p394) target = $region76
        $region75: #{tpu_custom_call.1} parent=51 // pred_region
          %398 = dma.done [#allocation13], 256
        $region76: #{tpu_custom_call.1} parent=51 // pred_fallthru
          _
        %p399 = pneg %p59
        %p400 = pneg %p56
        %s401 = sand.u32 %s26, 1
        %s402 = scalar_lea.sflag [#allocation7], %s401
        %s403 = sand.u32 %s74, 1
        %s404 = smul.addr %s403, 4
        %s405 = scalar_lea.vmem [#allocation6], %s404
        %p406 = pneg %p87
        %p407 = pneg %p84
        %p408 = pneg %p108
        %p409 = pneg %p105
        %p410 = pneg %p129
        %p411 = pneg %p126
        %p412 = pneg %p150
        %p413 = pneg %p147
        %p414 = pneg %p171
        %p415 = pneg %p168
        %p416 = pneg %p192
        %p417 = pneg %p189
        %p418 = pneg %p213
        %p419 = pneg %p210
        %p420 = pneg %p239
        %p421 = pneg %p236
        %s422 = smul.u32 2, %s30
        %p424 = scmp.eq.s32.totalorder %s31, 0
        // Predicated region
        $region77: #{tpu_custom_call.1} parent=51 // pred_check
          %p425 = pneg %p424
        $region78: #{tpu_custom_call.1} parent=51 // pred_check_branch
          %427 = sbr.rel (%p425) target = $region80
        $region79: #{tpu_custom_call.1} parent=51 // pred_region
          %vm428 = vcmask 25600
          %429 = vst.msk [vmem:[#allocation2] sm:$0x3] %vm428, 0.0
        $region80: #{tpu_custom_call.1} parent=51 // pred_fallthru
          _
        %v430 = vld [vmem:[#allocation2] sm:$0x3]
        %v431 = vld [vmem:[%s373] sm:$0x3]
        %v432 = vld [vmem:[%s373 + $0x2] sm:$0x3]
        %v433 = vunpack.c.l.bf16 %v431
        %v434 = vunpack.c.l.bf16 %v432
        %vm435 = vcmask 1043456
        %v436 = vsel %vm435, %v433, 0.0
        %437 = vadd.xlane.f32.xlu0 %v436
        %v438 = vpop.xlane.xlu0 %437
        %v439 = vsel %vm435, %v434, 0.0
        %440 = vadd.xlane.f32.xlu0 %v439
        %v441 = vpop.xlane.xlu0 %440
        %v444 = vlaneseq
        %v445 = vand.u32 %v444, 127
        %v446 = vperm.slane %v438, %v445
        %v447 = vperm.slane %v441, %v445
        %vm448 = vcmask 1041409
        %v449 = vsel %vm448, %v447, %v446
        %v451 = vadd.f32 %v430, %v449
        %vm452 = vcmask 25600
        %453 = vst.msk [vmem:[#allocation2] sm:$0x3] %vm452, %v451
        %p454 = scmp.eq.s32.totalorder %s31, 1
        // Predicated region
        $region81: #{tpu_custom_call.1} parent=51 // pred_check
          %p455 = pneg %p454
        $region82: #{tpu_custom_call.1} parent=51 // pred_check_branch
          %457 = sbr.rel (%p455) target = $region84
        $region83: #{tpu_custom_call.1} parent=51 // pred_region
          %v458 = vld [vmem:[#allocation2] sm:$0x3]
          %v459 = vmul.f32 %v458, 0.00390625
          %v460 = vpack.c.bf16 %v459, %v459
          %v461 = vld [vmem:[#allocation3] sm:$0x1]
          %v462 = vld [vmem:[#allocation8] sm:$0xf]
          %v463 = vld [vmem:[#allocation8 + $0x4] sm:$0xf]
          %v464 = vld [vmem:[%s3] sm:$0x3]
          %vm465 = vcmask 31744
          %v467 = vsel %vm465, %v460, 0
          %vm469 = vcmask 1041408
          %v471 = vsel %vm469, %v464, 0
          %473 = vmatpush.bf16.msra.mxu0 0
          %474 = vmatpush.bf16.msra.mxu0 0
          %475 = vmatpush.bf16.msra.mxu0 0
          %476 = vmatpush.bf16.msra.mxu0 0
          %477 = vmatpush.bf16.msra.mxu0 0
          %478 = vmatpush.bf16.msra.mxu0 0
          %479 = vmatpush.bf16.msra.mxu0 0
          %480 = vmatpush.bf16.msra.mxu0 %v471
          %481 = vmatmul.bf16.gmra.mxu0 %v467
          %v482 = vpop.f32.mrf.mxu0
          %v483 = vadd.f32 0.0, %v482
          %v484 = vpop.f32.mrf.mxu0
          %485 = vdwg.mxu0
          %v488 = vunpack.c.l.b16 %v462
          %v489 = vunpack.c.l.b16 %v463
          %v490 = vpack.c.b16 %v489, %v488
          %vm492 = vcmask 130048
          %v494 = vsel %vm492, %v461, 0
          %496 = vmatpush.bf16.msra.mxu0 0
          %497 = vmatpush.bf16.msra.mxu0 0
          %498 = vmatpush.bf16.msra.mxu0 0
          %499 = vmatpush.bf16.msra.mxu0 0
          %500 = vmatpush.bf16.msra.mxu0 0
          %501 = vmatpush.bf16.msra.mxu0 0
          %502 = vmatpush.bf16.msra.mxu0 0
          %503 = vmatpush.bf16.msra.mxu0 %v490
          %504 = vmatmul.bf16.gmra.mxu0 %v494
          %v505 = vpop.f32.mrf.mxu0
          %v506 = vadd.f32 %v483, %v505
          %v507 = vpop.f32.mrf.mxu0
          %508 = vdwg.mxu0
          %v509 = vld [vmem:[#allocation11] sm:$0x7]
          %v510 = vperm.slane %v509, 0
          %v511 = vadd.f32 %v506, %v510
          %vm512 = vcmask 254976
          %v513 = vsel %vm512, %v511, 0.0
          %514 = vadd.xlane.f32.xlu0 %v513
          %v515 = vpop.xlane.xlu0 %514
          %v516 = vrcp.pop 32.0
          %v517 = vmul.f32 32.0, %v516
          %v518 = vsub.f32 1.0, %v517
          %v519 = vmul.f32 %v516, %v518
          %v520 = vadd.f32 %v516, %v519
          %vm521 = vweird.f32 %v516
          %v522 = vsel %vm521, %v516, %v520
          %v523 = vmul.f32 %v515, %v522
          %v524 = vsub.f32 %v511, %v523
          %v525 = vmul.f32 %v524, %v524
          %v526 = vsel %vm512, %v525, 0.0
          %527 = vadd.xlane.f32.xlu0 %v526
          %v528 = vpop.xlane.xlu0 %527
          %v529 = vmul.f32 %v528, %v522
          %v530 = vadd.f32 %v529, 1e-05
          %v531 = vrsqrt.pop %v530
          %v532 = vmul.f32 %v531, %v530
          %v533 = vmul.f32 %v532, %v531
          %v534 = vmul.f32 0.5, %v533
          %v535 = vsub.f32 1.5, %v534
          %v536 = vmul.f32 %v531, %v535
          %vm537 = vweird.f32 %v530
          %vm538 = vweird.f32 %v531
          %vm539 = vmor %vm537, %vm538
          %v540 = vsel %vm539, %v531, %v536
          %v541 = vperm.slane %v509, 1
          %v542 = vmul.f32 %v541, %v540
          %v543 = vmul.f32 %v524, %v542
          %v544 = vperm.slane %v509, 2
          %v545 = vadd.f32 %v543, %v544
          %v546 = vmax.f32 %v545, 0.0
          %v547 = vpack.c.bf16 %v546, %v546
          %v548 = vld [vmem:[#allocation9] sm:$0xf]
          %v549 = vld [vmem:[#allocation9 + $0x4] sm:$0xf]
          %v550 = vld [vmem:[#allocation9 + $0x8] sm:$0xf]
          %v551 = vld [vmem:[#allocation9 + $0xc] sm:$0xf]
          %s552 = scalar_lea.vmem [#allocation11], 4
          %v553 = vld [vmem:[%s552] sm:$0x7]
          %v554 = vperm.slane %v553, 0
          %v559 = vunpack.c.l.b16 %v548
          %v560 = vunpack.c.l.b16 %v549
          %v561 = vunpack.c.l.b16 %v550
          %v562 = vunpack.c.l.b16 %v551
          %v563 = vpack.c.b16 %v560, %v559
          %v564 = vpack.c.b16 %v562, %v561
          %vm567 = vcmask 261120
          %v569 = vsel %vm567, %v547, 0
          %571 = vmatpush.bf16.msra.mxu0 0
          %572 = vmatpush.bf16.msra.mxu0 0
          %573 = vmatpush.bf16.msra.mxu0 0
          %574 = vmatpush.bf16.msra.mxu0 0
          %575 = vmatpush.bf16.msra.mxu0 0
          %576 = vmatpush.bf16.msra.mxu0 0
          %577 = vmatpush.bf16.msra.mxu0 %v564
          %578 = vmatpush.bf16.msra.mxu0 %v563
          %579 = vmatmul.bf16.gmra.mxu0 %v569
          %v580 = vpop.f32.mrf.mxu0
          %v581 = vadd.f32 %v554, %v580
          %v582 = vpop.f32.mrf.mxu0
          %583 = vdwg.mxu0
          %v584 = vsel %vm512, %v581, 0.0
          %585 = vadd.xlane.f32.xlu0 %v584
          %v586 = vpop.xlane.xlu0 %585
          %v587 = vmul.f32 %v586, %v522
          %v588 = vsub.f32 %v581, %v587
          %v589 = vmul.f32 %v588, %v588
          %v590 = vsel %vm512, %v589, 0.0
          %591 = vadd.xlane.f32.xlu0 %v590
          %v592 = vpop.xlane.xlu0 %591
          %v593 = vmul.f32 %v592, %v522
          %v594 = vadd.f32 %v593, 1e-05
          %v595 = vrsqrt.pop %v594
          %v596 = vmul.f32 %v595, %v594
          %v597 = vmul.f32 %v596, %v595
          %v598 = vmul.f32 0.5, %v597
          %v599 = vsub.f32 1.5, %v598
          %v600 = vmul.f32 %v595, %v599
          %vm601 = vweird.f32 %v594
          %vm602 = vweird.f32 %v595
          %vm603 = vmor %vm601, %vm602
          %v604 = vsel %vm603, %v595, %v600
          %v605 = vperm.slane %v553, 1
          %v606 = vmul.f32 %v605, %v604
          %v607 = vmul.f32 %v588, %v606
          %v608 = vperm.slane %v553, 2
          %v609 = vadd.f32 %v607, %v608
          %v610 = vmax.f32 %v609, 0.0
          %v611 = vpack.c.bf16 %v610, %v610
          %s612 = scalar_lea.vmem [#allocation9], 16
          %v613 = vld [vmem:[%s612] sm:$0xf]
          %v614 = vld [vmem:[%s612 + $0x4] sm:$0xf]
          %v615 = vld [vmem:[%s612 + $0x8] sm:$0xf]
          %v616 = vld [vmem:[%s612 + $0xc] sm:$0xf]
          %s617 = scalar_lea.vmem [#allocation11], 8
          %v618 = vld [vmem:[%s617] sm:$0x7]
          %v619 = vperm.slane %v618, 0
          %v624 = vunpack.c.l.b16 %v613
          %v625 = vunpack.c.l.b16 %v614
          %v626 = vunpack.c.l.b16 %v615
          %v627 = vunpack.c.l.b16 %v616
          %v628 = vpack.c.b16 %v625, %v624
          %v629 = vpack.c.b16 %v627, %v626
          %v633 = vsel %vm567, %v611, 0
          %635 = vmatpush.bf16.msra.mxu0 0
          %636 = vmatpush.bf16.msra.mxu0 0
          %637 = vmatpush.bf16.msra.mxu0 0
          %638 = vmatpush.bf16.msra.mxu0 0
          %639 = vmatpush.bf16.msra.mxu0 0
          %640 = vmatpush.bf16.msra.mxu0 0
          %641 = vmatpush.bf16.msra.mxu0 %v629
          %642 = vmatpush.bf16.msra.mxu0 %v628
          %643 = vmatmul.bf16.gmra.mxu0 %v633
          %v644 = vpop.f32.mrf.mxu0
          %v645 = vadd.f32 %v619, %v644
          %v646 = vpop.f32.mrf.mxu0
          %647 = vdwg.mxu0
          %v648 = vsel %vm512, %v645, 0.0
          %649 = vadd.xlane.f32.xlu0 %v648
          %v650 = vpop.xlane.xlu0 %649
          %v651 = vmul.f32 %v650, %v522
          %v652 = vsub.f32 %v645, %v651
          %v653 = vmul.f32 %v652, %v652
          %v654 = vsel %vm512, %v653, 0.0
          %655 = vadd.xlane.f32.xlu0 %v654
          %v656 = vpop.xlane.xlu0 %655
          %v657 = vmul.f32 %v656, %v522
          %v658 = vadd.f32 %v657, 1e-05
          %v659 = vrsqrt.pop %v658
          %v660 = vmul.f32 %v659, %v658
          %v661 = vmul.f32 %v660, %v659
          %v662 = vmul.f32 0.5, %v661
          %v663 = vsub.f32 1.5, %v662
          %v664 = vmul.f32 %v659, %v663
          %vm665 = vweird.f32 %v658
          %vm666 = vweird.f32 %v659
          %vm667 = vmor %vm665, %vm666
          %v668 = vsel %vm667, %v659, %v664
          %v669 = vperm.slane %v618, 1
          %v670 = vmul.f32 %v669, %v668
          %v671 = vmul.f32 %v652, %v670
          %v672 = vperm.slane %v618, 2
          %v673 = vadd.f32 %v671, %v672
          %v674 = vmax.f32 %v673, 0.0
          %v675 = vpack.c.bf16 %v674, %v674
          %v676 = vld [vmem:[#allocation12] sm:$0xf]
          %v677 = vld [vmem:[#allocation12 + $0x4] sm:$0xf]
          %v678 = vld [vmem:[#allocation12 + $0x8] sm:$0xf]
          %v679 = vld [vmem:[#allocation12 + $0xc] sm:$0xf]
          %v680 = vld [vmem:[%s7] sm:$0x1]
          %v682 = vperm.slane %v680, 0
          %v688 = vunpack.c.l.b16 %v676
          %v689 = vunpack.c.l.b16 %v677
          %v690 = vunpack.c.l.b16 %v678
          %v691 = vunpack.c.l.b16 %v679
          %v692 = vpack.c.b16 %v689, %v688
          %v693 = vpack.c.b16 %v691, %v690
          %v697 = vsel %vm567, %v675, 0
          %699 = vmatpush.bf16.msra.mxu0 0
          %700 = vmatpush.bf16.msra.mxu0 0
          %701 = vmatpush.bf16.msra.mxu0 0
          %702 = vmatpush.bf16.msra.mxu0 0
          %703 = vmatpush.bf16.msra.mxu0 0
          %704 = vmatpush.bf16.msra.mxu0 0
          %705 = vmatpush.bf16.msra.mxu0 %v693
          %706 = vmatpush.bf16.msra.mxu0 %v692
          %707 = vmatmul.bf16.gmra.mxu0 %v697
          %v708 = vpop.f32.mrf.mxu0
          %v709 = vadd.f32 %v682, %v708
          %v710 = vpop.f32.mrf.mxu0
          %711 = vdwg.mxu0
          %712 = vst [vmem:[#allocation14] sm:$0x3] %v709
        $region84: #{tpu_custom_call.1} parent=51 // pred_fallthru
          _
        // Predicated region
        $region85: #{tpu_custom_call.1} parent=51 // pred_check
          %p713 = pneg %p236
        $region86: #{tpu_custom_call.1} parent=51 // pred_check_branch
          %715 = sbr.rel (%p713) target = $region88
        $region87: #{tpu_custom_call.1} parent=51 // pred_region
          %717 = vsyncadd [#allocation5], 0
          %s718 = smul.addr %s30, 2
          %s719 = scalar_lea.hbm %s8, %s718
          %s721 = sshll.u32 [#allocation14], 4
          %s722 = int_to_ptr.vmem [resolvable:$true] %s721
          %s723 = sshll.u32 %s719, 4
          %s724 = int_to_ptr.hbm [resolvable:$true] %s723
          %726 = dma.vmem_to_hbm [thread:$0]  %s722, 32, %s724, [#allocation5]
        $region88: #{tpu_custom_call.1} parent=51 // pred_fallthru
          _
        // Predicated region
        $region89: #{tpu_custom_call.1} parent=51 // pred_check
          %p727 = pneg %p236
        $region90: #{tpu_custom_call.1} parent=51 // pred_check_branch
          %729 = sbr.rel (%p727) target = $region92
        $region91: #{tpu_custom_call.1} parent=51 // pred_region
          %731 = dma.done [#allocation5], 32
        $region92: #{tpu_custom_call.1} parent=51 // pred_fallthru
          _
      $region52: #{tpu_custom_call.1} parent=5 // pred_fallthru
        _
      %p732 = scmp.le.s32.totalorder 2, %s21
      // Predicated region
      $region93: #{tpu_custom_call.1} parent=5 // pred_check
        %p733 = pneg %p732
      $region94: #{tpu_custom_call.1} parent=5 // pred_check_branch
        %735 = sbr.rel (%p733) target = $region96
      $region95: #{tpu_custom_call.1} parent=5 // pred_region
        %s736 = ssub.s32 %s21, 2
      $region96: #{tpu_custom_call.1} parent=5 // pred_fallthru
        _
    $region6: #{tpu_custom_call.1} parent=1 // loop_footer
      %s25 = sadd.s32 1, %s21
    $region7: #{tpu_custom_call.1} parent=1 // loop_footer_branch
      %20 = sbr.rel target = $region3
    $region8: #{tpu_custom_call.1} parent=1 // loop_exit
      _
    %737 = vsyncpa [#allocation4], 1
    %s738 = scalar_lea.sflag [#allocation4], 1
    %739 = vsyncpa %s738, 1
    %740 = vsyncpa [#allocation7], 1
    %s741 = scalar_lea.sflag [#allocation7], 1
    %742 = vsyncpa %s741, 1
    %743 = vsyncpa [#allocation10], 1
    %744 = vsyncpa [#allocation13], 1
    %745 = vsyncpa [#allocation5], 1
    %s746 = scalar_lea.sflag [#allocation5], 1
    %747 = vsyncpa %s746, 1

</llo_original>
